<compile_context>
chip_gen: v7x
topology: tpu7x:2x2x1
jax: 0.10.0
libtpu: 0.0.40
codegen_flags: <defaults>
</compile_context>

<pallas_src>
import functools
import math

import jax
import jax.numpy as jnp
from jax.experimental import pallas as pl
from jax.experimental.pallas import tpu as pltpu

BF16 = jnp.bfloat16
F32 = jnp.float32
BN_EPS = 1e-5

_PARALLEL_1D = pltpu.CompilerParams(dimension_semantics=("parallel",))


def _round_up(x, m):
    return (x + m - 1) // m * m


def _pick_tm(m, tm_max):
    """Largest tile that divides m exactly (multiple of 16, then 8); None -> pad."""
    if m <= tm_max:
        return m
    cap16 = (min(tm_max, m) // 16) * 16
    for t in range(cap16, 15, -16):
        if m % t == 0:
            return t
    cap8 = (min(tm_max, m) // 8) * 8
    for t in range(cap8, 7, -8):
        if m % t == 0:
            return t
    return None


def _tile_rows(m, cap):
    tm = _pick_tm(m, cap)
    if tm is not None:
        return tm, m, False
    tm = min(cap, _round_up(m, 16))
    return tm, _round_up(m, tm), True


def _bn_compute_dtype():
    # bf16 VPU lanes exist on v6e/v7x; keep f32 BN math on older generations.
    try:
        kind = jax.devices()[0].device_kind.lower()
    except Exception:
        return F32
    if any(v in kind for v in ("v2", "v3", "v4", "v5")):
        return F32
    return BF16


_BN_DT = _bn_compute_dtype()


# ----------------------------------------------------------------------------
# Pallas kernels
# ----------------------------------------------------------------------------
def _make_matmul_bias_kernel(tm, valid_rows):
    """a @ w + b, plus per-channel (sum, sum-of-squares) of the f32 output."""
    def kernel(a_ref, w_ref, b_ref, o_ref, sum_ref, sq_ref):
        a = a_ref[...].astype(BF16)
        out = jnp.dot(a, w_ref[...], preferred_element_type=F32) + b_ref[...]
        o_ref[...] = out.astype(o_ref.dtype)
        if valid_rows is None:
            sel = out
        else:
            rows = (pl.program_id(0) * tm
                    + jax.lax.broadcasted_iota(jnp.int32, out.shape, 0))
            sel = jnp.where(rows < valid_rows, out, 0.0)
        sum_ref[0] = jnp.sum(sel, axis=0, keepdims=True)
        sq_ref[0] = jnp.sum(sel * sel, axis=0, keepdims=True)
    return kernel


def _make_bnrelu_matmul_kernel(tm, valid_rows, cdt):
    """relu(x*scale+shift) @ w + b, plus per-channel stats of the output."""
    def kernel(a_ref, s_ref, t_ref, w_ref, b_ref, o_ref, sum_ref, sq_ref):
        a = a_ref[...].astype(cdt)
        a = jnp.maximum(a * s_ref[...].astype(cdt) + t_ref[...].astype(cdt), 0.0)
        out = jnp.dot(a.astype(BF16), w_ref[...],
                      preferred_element_type=F32) + b_ref[...]
        o_ref[...] = out.astype(o_ref.dtype)
        if valid_rows is None:
            sel = out
        else:
            rows = (pl.program_id(0) * tm
                    + jax.lax.broadcasted_iota(jnp.int32, out.shape, 0))
            sel = jnp.where(rows < valid_rows, out, 0.0)
        sum_ref[0] = jnp.sum(sel, axis=0, keepdims=True)
        sq_ref[0] = jnp.sum(sel * sel, axis=0, keepdims=True)
    return kernel


def _make_bnrelu_conv3x3_kernel(H, W, CI, CO, cdt):
    """BN2+ReLU + 3x3 conv (pad=1) for one image.

    One (H*W, CI) x (CI, 9*CO) MXU matmul produces all 9 tap results; the tap
    slices are then shift-accumulated into a VMEM scratch accumulator.
    Column block ti = (dy+1)*3 + (dx+1) of the weight corresponds to
    PyTorch conv.weight[:, :, dy+1, dx+1].T.
    """
    def kernel(x_ref, s_ref, t_ref, w_ref, b_ref, o_ref, sum_ref, sq_ref, acc_ref):
        xb = x_ref[0].reshape(H * W, CI)
        s = s_ref[0].astype(cdt)
        t = t_ref[0].astype(cdt)
        yb = jnp.maximum(xb.astype(cdt) * s + t, 0.0).astype(BF16)
        res = jnp.dot(yb, w_ref[...], preferred_element_type=F32)   # (H*W, 9*CO)

        # center tap (dy=0, dx=0) initialises the accumulator (+ bias).
        acc_ref[...] = res[:, 4 * CO:5 * CO].reshape(H, W, CO) + b_ref[...]
        ti = 0
        for dy in (-1, 0, 1):
            for dx in (-1, 0, 1):
                if not (dy == 0 and dx == 0):
                    part = res[:, ti * CO:(ti + 1) * CO].reshape(H, W, CO)
                    h0, h1 = max(0, -dy), H - max(0, dy)
                    w0, w1 = max(0, -dx), W - max(0, dx)
                    # TODO(synk): lane-dense (H, W*CO) accumulation / register
                    # accumulation for the 14x14 / 7x7 stages.
                    acc_ref[h0:h1, w0:w1, :] += part[h0 + dy:h1 + dy,
                                                     w0 + dx:w1 + dx, :]
                ti += 1
        out = acc_ref[...]
        o_ref[0] = out.astype(o_ref.dtype)
        sum_ref[0] = jnp.sum(jnp.sum(out, axis=0), axis=0, keepdims=True)
        sq_ref[0] = jnp.sum(jnp.sum(out * out, axis=0), axis=0, keepdims=True)
    return kernel


def _make_maxpool_bn_kernel(ho, wo, c):
    """3x3 stride-2 max-pool of the raw conv output, then relu(s*pool+t).

    Input is padded host-side with a very negative value and pre-reshaped to
    (2*ho+2, wo+1, 2, c).  Applying the BN affine + ReLU after the pool is
    equivalent to before it because scale > 0 here (monotone).  Also emits the
    per-image per-channel (sum, sum-of-squares) of the result.
    """
    def kernel(x_ref, s_ref, t_ref, o_ref, sum_ref, sq_ref):
        x = x_ref[0]                                     # (2*ho+2, wo+1, 2, c) bf16
        m01 = jnp.maximum(x[:, 0:wo, 0, :], x[:, 0:wo, 1, :])
        cm = jnp.maximum(m01, x[:, 1:wo + 1, 0, :])      # (2*ho+2, wo, c)
        a = cm[0:2 * ho].reshape(ho, 2, wo, c)
        rm = jnp.maximum(a[:, 0], a[:, 1])
        b = cm[2:2 * ho + 2].reshape(ho, 2, wo, c)[:, 0]
        pooled = jnp.maximum(rm, b).astype(F32)          # (ho, wo, c)
        y = jnp.maximum(pooled * s_ref[...] + t_ref[...], 0.0)
        o_ref[0] = y.astype(o_ref.dtype)
        sum_ref[0] = jnp.sum(jnp.sum(y, axis=0), axis=0, keepdims=True)
        sq_ref[0] = jnp.sum(jnp.sum(y * y, axis=0), axis=0, keepdims=True)
    return kernel


def _make_bnrelu_avgpool_kernel(h, w2, c):
    """BN+ReLU fused with a 2x2 stride-2 average pool (one image per step)."""
    h2 = h // 2
    def kernel(x_ref, s_ref, t_ref, o_ref):
        x = x_ref[0].astype(F32)                         # (h, w2, 2, c)
        y = jnp.maximum(x * s_ref[...] + t_ref[...], 0.0)
        yw = y[:, :, 0, :] + y[:, :, 1, :]               # (h, w2, c)
        yh = yw.reshape(h2, 2, w2, c)
        o_ref[0] = ((yh[:, 0] + yh[:, 1]) * 0.25).astype(o_ref.dtype)
    return kernel


def _global_avgpool_kernel(x_ref, o_ref):
    x = x_ref[...].astype(F32)                           # (N, H, W, C)
    inv = 1.0 / (x_ref.shape[1] * x_ref.shape[2])
    o_ref[...] = jnp.sum(jnp.sum(x, axis=1), axis=1) * inv


# ----------------------------------------------------------------------------
# Pallas wrappers
# ----------------------------------------------------------------------------
@functools.partial(jax.jit, static_argnames=("out_dtype",))
def matmul_bias_stats(a, w, b, out_dtype=BF16):
    m, k = a.shape
    n = w.shape[1]
    tm, mp, padded = _tile_rows(m, 1024)
    if padded:
        a = jnp.pad(a, ((0, mp - m), (0, 0)))
    gm = mp // tm
    kernel = _make_matmul_bias_kernel(tm, m if padded else None)
    out, s, q = pl.pallas_call(
        kernel,
        out_shape=(jax.ShapeDtypeStruct((mp, n), out_dtype),
                   jax.ShapeDtypeStruct((gm, 1, n), F32),
                   jax.ShapeDtypeStruct((gm, 1, n), F32)),
        grid=(gm,),
        in_specs=[pl.BlockSpec((tm, k), lambda i: (i, 0)),
                  pl.BlockSpec((k, n), lambda i: (0, 0)),
                  pl.BlockSpec((1, n), lambda i: (0, 0))],
        out_specs=(pl.BlockSpec((tm, n), lambda i: (i, 0)),
                   pl.BlockSpec((1, 1, n), lambda i: (i, 0, 0)),
                   pl.BlockSpec((1, 1, n), lambda i: (i, 0, 0))),
        compiler_params=_PARALLEL_1D,
    )(a, w, b.reshape(1, n))
    if padded:
        out = out[:m]
    return out, jnp.sum(s[:, 0, :], axis=0), jnp.sum(q[:, 0, :], axis=0)


@jax.jit
def bnrelu_matmul_stats(a, scale, shift, w, b):
    m, k = a.shape
    n = w.shape[1]
    tm, mp, padded = _tile_rows(m, 1024)
    if padded:
        a = jnp.pad(a, ((0, mp - m), (0, 0)))
    gm = mp // tm
    kernel = _make_bnrelu_matmul_kernel(tm, m if padded else None, _BN_DT)
    out, s, q = pl.pallas_call(
        kernel,
        out_shape=(jax.ShapeDtypeStruct((mp, n), BF16),
                   jax.ShapeDtypeStruct((gm, 1, n), F32),
                   jax.ShapeDtypeStruct((gm, 1, n), F32)),
        grid=(gm,),
        in_specs=[pl.BlockSpec((tm, k), lambda i: (i, 0)),
                  pl.BlockSpec((1, k), lambda i: (0, 0)),
                  pl.BlockSpec((1, k), lambda i: (0, 0)),
                  pl.BlockSpec((k, n), lambda i: (0, 0)),
                  pl.BlockSpec((1, n), lambda i: (0, 0))],
        out_specs=(pl.BlockSpec((tm, n), lambda i: (i, 0)),
                   pl.BlockSpec((1, 1, n), lambda i: (i, 0, 0)),
                   pl.BlockSpec((1, 1, n), lambda i: (i, 0, 0))),
        compiler_params=_PARALLEL_1D,
    )(a, scale.reshape(1, k), shift.reshape(1, k), w, b.reshape(1, n))
    if padded:
        out = out[:m]
    return out, jnp.sum(s[:, 0, :], axis=0), jnp.sum(q[:, 0, :], axis=0)


@jax.jit
def bnrelu_conv3x3(x, scale, shift, w, b):
    n, H, W, CI = x.shape
    CO = w.shape[1] // 9
    kernel = _make_bnrelu_conv3x3_kernel(H, W, CI, CO, _BN_DT)
    out, s, q = pl.pallas_call(
        kernel,
        out_shape=(jax.ShapeDtypeStruct((n, H, W, CO), BF16),
                   jax.ShapeDtypeStruct((n, 1, CO), F32),
                   jax.ShapeDtypeStruct((n, 1, CO), F32)),
        grid=(n,),
        in_specs=[pl.BlockSpec((1, H, W, CI), lambda i: (i, 0, 0, 0)),
                  pl.BlockSpec((1, 1, CI), lambda i: (0, 0, 0)),
                  pl.BlockSpec((1, 1, CI), lambda i: (0, 0, 0)),
                  pl.BlockSpec((CI, 9 * CO), lambda i: (0, 0)),
                  pl.BlockSpec((1, 1, CO), lambda i: (0, 0, 0))],
        out_specs=(pl.BlockSpec((1, H, W, CO), lambda i: (i, 0, 0, 0)),
                   pl.BlockSpec((1, 1, CO), lambda i: (i, 0, 0)),
                   pl.BlockSpec((1, 1, CO), lambda i: (i, 0, 0))),
        scratch_shapes=[pltpu.VMEM((H, W, CO), F32)],
        compiler_params=_PARALLEL_1D,
    )(x, scale.reshape(1, 1, CI), shift.reshape(1, 1, CI), w, b.reshape(1, 1, CO))
    return out, jnp.sum(s[:, 0, :], axis=0), jnp.sum(q[:, 0, :], axis=0)


@jax.jit
def maxpool_bn_relu_stats(x, scale, shift):
    """Max-pool 3x3 s2 p1 of the raw conv output, then relu(bn(.)), plus stats."""
    n, h, w, c = x.shape
    ho, wo = h // 2, w // 2
    neg = float(jnp.finfo(BF16).min)
    # TODO(synk): handle the pool boundary in-kernel to drop this padded copy.
    xp = jnp.pad(x, ((0, 0), (1, 1), (1, 1), (0, 0)), constant_values=neg)
    xp = xp.reshape(n, h + 2, (w + 2) // 2, 2, c)
    kernel = _make_maxpool_bn_kernel(ho, wo, c)
    out, s, q = pl.pallas_call(
        kernel,
        out_shape=(jax.ShapeDtypeStruct((n, ho, wo, c), BF16),
                   jax.ShapeDtypeStruct((n, 1, c), F32),
                   jax.ShapeDtypeStruct((n, 1, c), F32)),
        grid=(n,),
        in_specs=[pl.BlockSpec((1, h + 2, (w + 2) // 2, 2, c),
                               lambda i: (i, 0, 0, 0, 0)),
                  pl.BlockSpec((1, 1, c), lambda i: (0, 0, 0)),
                  pl.BlockSpec((1, 1, c), lambda i: (0, 0, 0))],
        out_specs=(pl.BlockSpec((1, ho, wo, c), lambda i: (i, 0, 0, 0)),
                   pl.BlockSpec((1, 1, c), lambda i: (i, 0, 0)),
                   pl.BlockSpec((1, 1, c), lambda i: (i, 0, 0))),
        compiler_params=_PARALLEL_1D,
    )(xp, scale.reshape(1, 1, c), shift.reshape(1, 1, c))
    return out, jnp.sum(s[:, 0, :], axis=0), jnp.sum(q[:, 0, :], axis=0)


@jax.jit
def bnrelu_avgpool2x2(x, scale, shift):
    n, h, w, c = x.shape
    w2 = w // 2
    xr = x.reshape(n, h, w2, 2, c)
    kernel = _make_bnrelu_avgpool_kernel(h, w2, c)
    return pl.pallas_call(
        kernel,
        out_shape=jax.ShapeDtypeStruct((n, h // 2, w2, c), BF16),
        grid=(n,),
        in_specs=[pl.BlockSpec((1, h, w2, 2, c), lambda i: (i, 0, 0, 0, 0)),
                  pl.BlockSpec((1, 1, 1, c), lambda i: (0, 0, 0, 0)),
                  pl.BlockSpec((1, 1, 1, c), lambda i: (0, 0, 0, 0))],
        out_specs=pl.BlockSpec((1, h // 2, w2, c), lambda i: (i, 0, 0, 0)),
        compiler_params=_PARALLEL_1D,
    )(xr, scale.reshape(1, 1, 1, c), shift.reshape(1, 1, 1, c))


@jax.jit
def global_avgpool(x):
    n, h, w, c = x.shape
    return pl.pallas_call(
        _global_avgpool_kernel,
        out_shape=jax.ShapeDtypeStruct((n, c), F32),
        grid=(1,),
        in_specs=[pl.BlockSpec((n, h, w, c), lambda i: (0, 0, 0, 0))],
        out_specs=pl.BlockSpec((n, c), lambda i: (0, 0)),
    )(x)


# ----------------------------------------------------------------------------
# Plain-JAX glue
# ----------------------------------------------------------------------------
def _scale_shift(ch_sum, ch_sq, count, gamma, beta):
    # BatchNorm2d training-mode batch statistics from carried per-channel sums.
    mean = ch_sum / count
    var = jnp.maximum(ch_sq / count - mean * mean, 0.0)
    s = gamma * jax.lax.rsqrt(var + BN_EPS)
    return s, beta - mean * s


def _im2col(x, k, stride, pad):
    # only used once, for the 7x7 stride-2 stem convolution.
    n, h, w, c = x.shape
    ho = (h + 2 * pad - k) // stride + 1
    wo = (w + 2 * pad - k) // stride + 1
    xp = jnp.pad(x, ((0, 0), (pad, pad), (pad, pad), (0, 0)))
    views = []
    for ky in range(k):
        for kx in range(k):
            views.append(xp[:, ky:ky + stride * (ho - 1) + 1:stride,
                            kx:kx + stride * (wo - 1) + 1:stride, :])
    cols = jnp.stack(views, axis=3).reshape(n * ho * wo, k * k * c)
    return cols, (n, ho, wo)


# ----------------------------------------------------------------------------
# Model blocks
# ----------------------------------------------------------------------------
def dense_block_forward(p, x, ch_sum, ch_sq, count):
    n, h, w, c = x.shape
    s1, t1 = _scale_shift(ch_sum, ch_sq, count, p["bn1_g"], p["bn1_b"])
    hid, h_sum, h_sq = bnrelu_matmul_stats(x.reshape(n * h * w, c),
                                           s1, t1, p["w1"], p["b1"])
    s2, t2 = _scale_shift(h_sum, h_sq, count, p["bn2_g"], p["bn2_b"])
    out32, o_sum, o_sq = bnrelu_conv3x3(hid.reshape(n, h, w, 128),
                                        s2, t2, p["w2"], p["b2"])
    # TODO(synk): write the 32 new channels into a preallocated channel slab
    # (input_output_aliases) instead of re-concatenating the feature map, and
    # fuse whole 14x14/7x7 blocks into a single VMEM-resident pallas_call.
    x = jnp.concatenate([x, out32], axis=-1)
    return x, jnp.concatenate([ch_sum, o_sum]), jnp.concatenate([ch_sq, o_sq])


def transition_forward(p, x, ch_sum, ch_sq, count):
    # bn -> relu -> avgpool -> 1x1 conv  (== bn -> relu -> conv -> avgpool,
    # since the 1x1 conv is linear); saves 4x conv work and bandwidth.
    n, h, w, c = x.shape
    s, t = _scale_shift(ch_sum, ch_sq, count, p["bn_g"], p["bn_b"])
    pooled = bnrelu_avgpool2x2(x, s, t)                       # (n, h/2, w/2, c)
    m4 = n * (h // 2) * (w // 2)
    y, y_sum, y_sq = matmul_bias_stats(pooled.reshape(m4, c), p["w"], p["b"])
    co = p["w"].shape[1]
    return y.reshape(n, h // 2, w // 2, co), y_sum, y_sq, m4


def resnet_forward(p, x_nchw):
    x = jnp.transpose(x_nchw, (0, 2, 3, 1)).astype(BF16)       # NCHW -> NHWC
    # stem: conv 7x7 s2 p3 (+stats) -> fused [maxpool 3x3 s2 p1 + BN + ReLU]
    cols, (n, ho, wo) = _im2col(x, 7, 2, 3)
    c1, c1_sum, c1_sq = matmul_bias_stats(cols, p["conv1_w"], p["conv1_b"])
    m = n * ho * wo
    s, t = _scale_shift(c1_sum, c1_sq, m, p["bn1_g"], p["bn1_b"])
    h, ch_sum, ch_sq = maxpool_bn_relu_stats(c1.reshape(n, ho, wo, 64), s, t)
    count = h.shape[0] * h.shape[1] * h.shape[2]               # (n, 56, 56, 64)

    for name in ("1", "2", "3", "4"):
        for blk in p["layer" + name]:
            h, ch_sum, ch_sq = dense_block_forward(blk, h, ch_sum, ch_sq, count)
        if name != "4":
            h, ch_sum, ch_sq, count = transition_forward(
                p["trans" + name], h, ch_sum, ch_sq, count)

    pooled = global_avgpool(h)                                 # (n, 1024) f32
    logits, _, _ = matmul_bias_stats(pooled, p["fc_w"], p["fc_b"],
                                     out_dtype=F32)
    return logits


# ----------------------------------------------------------------------------
# Deterministic synthetic parameters (mirrors the nn.Module __init__ shapes)
# ----------------------------------------------------------------------------
def build_params(key):
    counter = [0]

    def nk():
        counter[0] += 1
        return jax.random.fold_in(key, counter[0])

    def dense_blk(cin):
        w1 = (jax.random.normal(nk(), (cin, 128), F32)
              / math.sqrt(cin)).astype(BF16)
        # 3x3 conv weights, 9 taps concatenated along the output (N) axis:
        # columns [ti*32:(ti+1)*32] correspond to tap ti = (dy+1)*3 + (dx+1).
        w2 = (jax.random.normal(nk(), (128, 9 * 32), F32)
              / math.sqrt(9 * 128)).astype(BF16)
        return dict(bn1_g=jnp.ones((cin,), F32), bn1_b=jnp.zeros((cin,), F32),
                    w1=w1, b1=jnp.zeros((128,), F32),
                    bn2_g=jnp.ones((128,), F32), bn2_b=jnp.zeros((128,), F32),
                    w2=w2, b2=jnp.zeros((32,), F32))

    def dense_layer(cin, constant, nlayers):
        blocks = []
        for _ in range(nlayers):
            blocks.append(dense_blk(cin))
            cin = 32 * (constant + 3)
            constant += 1
        return blocks

    def transition(cin, cout):
        w = (jax.random.normal(nk(), (cin, cout), F32) / math.sqrt(cin)).astype(BF16)
        return dict(bn_g=jnp.ones((cin,), F32), bn_b=jnp.zeros((cin,), F32),
                    w=w, b=jnp.zeros((cout,), F32))

    p = {}
    p["conv1_w"] = (jax.random.normal(nk(), (147, 64), F32)
                    / math.sqrt(147.0)).astype(BF16)
    p["conv1_b"] = jnp.zeros((64,), F32)
    p["bn1_g"] = jnp.ones((64,), F32)
    p["bn1_b"] = jnp.zeros((64,), F32)
    p["layer1"] = dense_layer(64, 0, 6)          # 64  -> 256
    p["trans1"] = transition(256, 128)
    p["layer2"] = dense_layer(128, 2, 12)        # 128 -> 512
    p["trans2"] = transition(512, 256)
    p["layer3"] = dense_layer(256, 6, 24)        # 256 -> 1024
    p["trans3"] = transition(1024, 512)
    p["layer4"] = dense_layer(512, 14, 16)       # 512 -> 1024
    p["fc_w"] = (jax.random.normal(nk(), (1024, 1000), F32)
                 / math.sqrt(1024.0)).astype(BF16)
    p["fc_b"] = jnp.zeros((1000,), F32)
    return p


# ----------------------------------------------------------------------------
if __name__ == "__main__":
    # Spatial size must be 224: the head (AvgPool2d((7,7)) + Linear(1024,1000))
    # hard-codes the final 7x7x1024 feature map.  Batch reduced to 2.
    x = jax.random.normal(jax.random.PRNGKey(0), (2, 3, 224, 224), jnp.float32)
    params = build_params(jax.random.PRNGKey(1))

    out = resnet_forward(params, x)
    out = jax.block_until_ready(out)

    assert out.shape == (2, 1000), out.shape
    assert out.dtype == jnp.float32
    assert bool(jnp.all(jnp.isfinite(out)))
    print("KERNEL_OK")
</pallas_src>

<mosaic_0001>
module attributes {stable_mosaic.version = 11 : i64} {
  func.func @kernel(%arg0: i32, %arg1: memref<896x147xbf16, #tpu.memory_space<vmem>>, %arg2: memref<147x64xbf16, #tpu.memory_space<vmem>>, %arg3: memref<1x64xf32, #tpu.memory_space<vmem>>, %arg4: memref<896x64xbf16, #tpu.memory_space<vmem>>, %arg5: memref<1x1x64xf32, #tpu.memory_space<vmem>>, %arg6: memref<1x1x64xf32, #tpu.memory_space<vmem>>) attributes {dimension_semantics = [#tpu.dimension_semantics<parallel>], iteration_bounds = array<i64: 28>, scalar_prefetch = 0 : i64, scratch_operands = 0 : i64, tpu.core_type = #tpu.core_type<tc>, window_params = [{transform_indices = @transform_0, window_bounds = array<i64: 896, 147>}, {pipeline_mode = #tpu.pipeline_mode<synchronous>, transform_indices = @transform_1, window_bounds = array<i64: 147, 64>}, {pipeline_mode = #tpu.pipeline_mode<synchronous>, transform_indices = @transform_2, window_bounds = array<i64: 1, 64>}, {transform_indices = @transform_3, window_bounds = array<i64: 896, 64>}, {transform_indices = @transform_4, window_bounds = array<i64: 1, 1, 64>}, {transform_indices = @transform_5, window_bounds = array<i64: 1, 1, 64>}]} {
    %c0 = arith.constant 0 : index
    %c0_0 = arith.constant 0 : index
    %0 = vector.load %arg1[%c0, %c0_0] : memref<896x147xbf16, #tpu.memory_space<vmem>>, vector<896x147xbf16>
    %c0_1 = arith.constant 0 : index
    %c0_2 = arith.constant 0 : index
    %1 = vector.load %arg2[%c0_1, %c0_2] : memref<147x64xbf16, #tpu.memory_space<vmem>>, vector<147x64xbf16>
    %cst = arith.constant dense<0.000000e+00> : vector<896x64xf32>
    %2 = tpu.matmul %0, %1, %cst {dimension_numbers = #tpu.dot_dimension_numbers<[1], [0], [0], [1], [0, 0, 1, 1], [], []>} : vector<896x147xbf16>, vector<147x64xbf16>, vector<896x64xf32> -> vector<896x64xf32>
    %c0_3 = arith.constant 0 : index
    %c0_4 = arith.constant 0 : index
    %3 = vector.load %arg3[%c0_3, %c0_4] : memref<1x64xf32, #tpu.memory_space<vmem>>, vector<1x64xf32>
    %4 = vector.broadcast %3 : vector<1x64xf32> to vector<896x64xf32>
    %5 = arith.addf %2, %4 : vector<896x64xf32>
    %6 = arith.truncf %5 : vector<896x64xf32> to vector<896x64xbf16>
    %c0_5 = arith.constant 0 : index
    %c0_6 = arith.constant 0 : index
    %7 = vector.load %arg4[%c0_5, %c0_6] : memref<896x64xbf16, #tpu.memory_space<vmem>>, vector<896x64xbf16>
    tpu.vector_store %arg4[%c0_5, %c0_6], %6 {strides = array<i32>} : memref<896x64xbf16, #tpu.memory_space<vmem>>, vector<896x64xbf16>,
    %cst_7 = arith.constant dense<0.000000e+00> : vector<64xf32>
    %8 = vector.multi_reduction <add>, %5, %cst_7 [0] : vector<896x64xf32> to vector<64xf32>
    %9 = vector.shape_cast %8 : vector<64xf32> to vector<1x64xf32>
    %c0_8 = arith.constant 0 : index
    %c0_9 = arith.constant 0 : index
    %c0_10 = arith.constant 0 : index
    %10 = vector.load %arg5[%c0_8, %c0_9, %c0_10] : memref<1x1x64xf32, #tpu.memory_space<vmem>>, vector<1x1x64xf32>
    %11 = vector.shape_cast %10 : vector<1x1x64xf32> to vector<1x64xf32>
    %12 = vector.shape_cast %9 : vector<1x64xf32> to vector<1x1x64xf32>
    tpu.vector_store %arg5[%c0_8, %c0_9, %c0_10], %12 {strides = array<i32>} : memref<1x1x64xf32, #tpu.memory_space<vmem>>, vector<1x1x64xf32>,
    %13 = arith.mulf %5, %5 : vector<896x64xf32>
    %cst_11 = arith.constant dense<0.000000e+00> : vector<64xf32>
    %14 = vector.multi_reduction <add>, %13, %cst_11 [0] : vector<896x64xf32> to vector<64xf32>
    %15 = vector.shape_cast %14 : vector<64xf32> to vector<1x64xf32>
    %c0_12 = arith.constant 0 : index
    %c0_13 = arith.constant 0 : index
    %c0_14 = arith.constant 0 : index
    %16 = vector.load %arg6[%c0_12, %c0_13, %c0_14] : memref<1x1x64xf32, #tpu.memory_space<vmem>>, vector<1x1x64xf32>
    %17 = vector.shape_cast %16 : vector<1x1x64xf32> to vector<1x64xf32>
    %18 = vector.shape_cast %15 : vector<1x64xf32> to vector<1x1x64xf32>
    tpu.vector_store %arg6[%c0_12, %c0_13, %c0_14], %18 {strides = array<i32>} : memref<1x1x64xf32, #tpu.memory_space<vmem>>, vector<1x1x64xf32>,
    return
  }
  func.func @transform_0(%arg0: i32) -> (i32, i32) {
    %c0_i32 = arith.constant 0 : i32
    %c0_i32_0 = arith.constant 0 : i32
    return %arg0, %c0_i32 : i32, i32
  }
  func.func @transform_1(%arg0: i32) -> (i32, i32) {
    %c0_i32 = arith.constant 0 : i32
    %c0_i32_0 = arith.constant 0 : i32
    %c0_i32_1 = arith.constant 0 : i32
    return %c0_i32, %c0_i32_0 : i32, i32
  }
  func.func @transform_2(%arg0: i32) -> (i32, i32) {
    %c0_i32 = arith.constant 0 : i32
    %c0_i32_0 = arith.constant 0 : i32
    %c0_i32_1 = arith.constant 0 : i32
    return %c0_i32, %c0_i32_0 : i32, i32
  }
  func.func @transform_3(%arg0: i32) -> (i32, i32) {
    %c0_i32 = arith.constant 0 : i32
    %c0_i32_0 = arith.constant 0 : i32
    return %arg0, %c0_i32 : i32, i32
  }
  func.func @transform_4(%arg0: i32) -> (i32, i32, i32) {
    %c0_i32 = arith.constant 0 : i32
    %c0_i32_0 = arith.constant 0 : i32
    %c0_i32_1 = arith.constant 0 : i32
    return %arg0, %c0_i32, %c0_i32_0 : i32, i32, i32
  }
  func.func @transform_5(%arg0: i32) -> (i32, i32, i32) {
    %c0_i32 = arith.constant 0 : i32
    %c0_i32_0 = arith.constant 0 : i32
    %c0_i32_1 = arith.constant 0 : i32
    return %arg0, %c0_i32, %c0_i32_0 : i32, i32, i32
  }
}

</mosaic_0001>

<llo_original>
// kernel: matmul_bias_stats.1
$region0: #{matmul_bias_stats.1}
  #allocation0 [shape = 'u32[]', space=smem, size = 0x4, offset = 0x4, fixed_abs, tag = 'smem constant byte address 0x4 - core index']
  #allocation1 [shape = 'u32[144,128]{1,0:T(1,128)}', space=vmem, size = 0x12000, scoped, tag = 'internal scratch']
  %s0 = inlined_call_operand.vmem [shape: bf16[25088,147], index: 0, kind: input, shape index: {}]
  %s1 = inlined_call_operand.vmem [shape: bf16[147,64], index: 1, kind: input, shape index: {}]
  %s2 = inlined_call_operand.vmem [shape: f32[1,64], index: 2, kind: input, shape index: {}]
  %s3 = inlined_call_operand.vmem [shape: bf16[25088,64], index: 3, kind: output, shape index: {0}]
  %s4 = inlined_call_operand.vmem [shape: f32[28,1,64], index: 4, kind: output, shape index: {1}]
  %s5 = inlined_call_operand.vmem [shape: f32[28,1,64], index: 5, kind: output, shape index: {2}]
  %6 = xla_tuple %s3, %s4, %s5
  %s7 = sld [smem:[#allocation0]]
  $region61: #{matmul_bias_stats.1} parent=0
    _
  %s9 = ssub.s32 1, %s7
  %s10 = scalar_select 0, %s9, %s7
  loop: start=0, step=1, limit=30
  $region2: #{matmul_bias_stats.1} parent=0 // loop_pre_header
    _
  $region3: #{matmul_bias_stats.1} parent=0 // loop_header
    %s12 = sphi 0, %s16
    %p13 = scmp.ge.s32.totalorder %s12, 30
    %s22 = sphi 0, %s24
    %s25 = sphi 0, %s22
    %s26 = sphi 0, %s25
    %s42 = sphi 0, %s26
    %s46 = sphi 0, %s46
    %s48 = sphi 0, %s46
    %s49 = sphi 0, %s48
    %s63 = sphi 0, %s49
    %s67 = sphi 0, %s67
    %s69 = sphi 0, %s67
    %s70 = sphi 0, %s69
    %s84 = sphi 0, %s70
    %s90 = sphi 0, %s92
    %s93 = sphi 0, %s90
    %s94 = sphi 0, %s93
    %s110 = sphi 0, %s94
    %s116 = sphi 0, %s118
    %s119 = sphi 0, %s116
    %s120 = sphi 0, %s119
    %s136 = sphi 0, %s120
    %s142 = sphi 0, %s144
    %s145 = sphi 0, %s142
    %s146 = sphi 0, %s145
    %s162 = sphi 0, %s146
  $region4: #{matmul_bias_stats.1} parent=0 // loop_header_branch
    %15 = sbr.rel (%p13) target = $region8
  $region5: #{matmul_bias_stats.1} parent=0 // loop_body
    %s17 = ssub.s32 %s12, 1
    %s18 = ssub.s32 %s12, 2
    %s19 = sadd.s32 %s12, 1
    %s20 = ssub.s32 %s12, %s19
    %p21 = scmp.eq.s32.totalorder %s20, 0
    %s23 = sadd.s32 %s22, 1
    %s24 = scalar_select %p21, %s22, %s23
    %p27 = pneg %p21
    %p28 = scmp.eq.s32.totalorder %s12, 27
    %p29 = por %p27, %p28
    %p30 = scmp.ne.s32.totalorder %s22, %s25
    %p31 = scmp.eq.s32.totalorder %s12, 0
    %p32 = por %p30, %p31
    %p33 = scmp.ne.s32.totalorder %s22, %s25
    %p34 = scmp.eq.s32.totalorder %s17, 27
    %p35 = por %p33, %p34
    %p36 = scmp.ne.s32.totalorder %s25, %s26
    %p37 = scmp.eq.s32.totalorder %s17, 0
    %p38 = por %p36, %p37
    %p39 = scmp.ne.s32.totalorder %s25, %s26
    %p40 = scmp.eq.s32.totalorder %s18, 27
    %p41 = por %p39, %p40
    %p43 = scmp.ne.s32.totalorder %s26, %s42
    %p44 = scmp.eq.s32.totalorder %s18, 0
    %p45 = por %p43, %p44
    %s47 = sadd.s32 %s46, 1
    %p50 = scmp.eq.s32.totalorder %s12, 27
    %p51 = scmp.ne.s32.totalorder %s46, %s48
    %p52 = scmp.eq.s32.totalorder %s12, 0
    %p53 = por %p51, %p52
    %p54 = scmp.ne.s32.totalorder %s46, %s48
    %p55 = scmp.eq.s32.totalorder %s17, 27
    %p56 = por %p54, %p55
    %p57 = scmp.ne.s32.totalorder %s48, %s49
    %p58 = scmp.eq.s32.totalorder %s17, 0
    %p59 = por %p57, %p58
    %p60 = scmp.ne.s32.totalorder %s48, %s49
    %p61 = scmp.eq.s32.totalorder %s18, 27
    %p62 = por %p60, %p61
    %p64 = scmp.ne.s32.totalorder %s49, %s63
    %p65 = scmp.eq.s32.totalorder %s18, 0
    %p66 = por %p64, %p65
    %s68 = sadd.s32 %s67, 1
    %p71 = scmp.eq.s32.totalorder %s12, 27
    %p72 = scmp.ne.s32.totalorder %s67, %s69
    %p73 = scmp.eq.s32.totalorder %s12, 0
    %p74 = por %p72, %p73
    %p75 = scmp.ne.s32.totalorder %s67, %s69
    %p76 = scmp.eq.s32.totalorder %s17, 27
    %p77 = por %p75, %p76
    %p78 = scmp.ne.s32.totalorder %s69, %s70
    %p79 = scmp.eq.s32.totalorder %s17, 0
    %p80 = por %p78, %p79
    %p81 = scmp.ne.s32.totalorder %s69, %s70
    %p82 = scmp.eq.s32.totalorder %s18, 27
    %p83 = por %p81, %p82
    %p85 = scmp.ne.s32.totalorder %s70, %s84
    %p86 = scmp.eq.s32.totalorder %s18, 0
    %p87 = por %p85, %p86
    %s88 = ssub.s32 %s12, %s19
    %p89 = scmp.eq.s32.totalorder %s88, 0
    %s91 = sadd.s32 %s90, 1
    %s92 = scalar_select %p89, %s90, %s91
    %p95 = pneg %p89
    %p96 = scmp.eq.s32.totalorder %s12, 27
    %p97 = por %p95, %p96
    %p98 = scmp.ne.s32.totalorder %s90, %s93
    %p99 = scmp.eq.s32.totalorder %s12, 0
    %p100 = por %p98, %p99
    %p101 = scmp.ne.s32.totalorder %s90, %s93
    %p102 = scmp.eq.s32.totalorder %s17, 27
    %p103 = por %p101, %p102
    %p104 = scmp.ne.s32.totalorder %s93, %s94
    %p105 = scmp.eq.s32.totalorder %s17, 0
    %p106 = por %p104, %p105
    %p107 = scmp.ne.s32.totalorder %s93, %s94
    %p108 = scmp.eq.s32.totalorder %s18, 27
    %p109 = por %p107, %p108
    %p111 = scmp.ne.s32.totalorder %s94, %s110
    %p112 = scmp.eq.s32.totalorder %s18, 0
    %p113 = por %p111, %p112
    %s114 = ssub.s32 %s12, %s19
    %p115 = scmp.eq.s32.totalorder %s114, 0
    %s117 = sadd.s32 %s116, 1
    %s118 = scalar_select %p115, %s116, %s117
    %p121 = pneg %p115
    %p122 = scmp.eq.s32.totalorder %s12, 27
    %p123 = por %p121, %p122
    %p124 = scmp.ne.s32.totalorder %s116, %s119
    %p125 = scmp.eq.s32.totalorder %s12, 0
    %p126 = por %p124, %p125
    %p127 = scmp.ne.s32.totalorder %s116, %s119
    %p128 = scmp.eq.s32.totalorder %s17, 27
    %p129 = por %p127, %p128
    %p130 = scmp.ne.s32.totalorder %s119, %s120
    %p131 = scmp.eq.s32.totalorder %s17, 0
    %p132 = por %p130, %p131
    %p133 = scmp.ne.s32.totalorder %s119, %s120
    %p134 = scmp.eq.s32.totalorder %s18, 27
    %p135 = por %p133, %p134
    %p137 = scmp.ne.s32.totalorder %s120, %s136
    %p138 = scmp.eq.s32.totalorder %s18, 0
    %p139 = por %p137, %p138
    %s140 = ssub.s32 %s12, %s19
    %p141 = scmp.eq.s32.totalorder %s140, 0
    %s143 = sadd.s32 %s142, 1
    %s144 = scalar_select %p141, %s142, %s143
    %p147 = pneg %p141
    %p148 = scmp.eq.s32.totalorder %s12, 27
    %p149 = por %p147, %p148
    %p150 = scmp.ne.s32.totalorder %s142, %s145
    %p151 = scmp.eq.s32.totalorder %s12, 0
    %p152 = por %p150, %p151
    %p153 = scmp.ne.s32.totalorder %s142, %s145
    %p154 = scmp.eq.s32.totalorder %s17, 27
    %p155 = por %p153, %p154
    %p156 = scmp.ne.s32.totalorder %s145, %s146
    %p157 = scmp.eq.s32.totalorder %s17, 0
    %p158 = por %p156, %p157
    %p159 = scmp.ne.s32.totalorder %s145, %s146
    %p160 = scmp.eq.s32.totalorder %s18, 27
    %p161 = por %p159, %p160
    %p163 = scmp.ne.s32.totalorder %s146, %s162
    %p164 = scmp.eq.s32.totalorder %s18, 0
    %p165 = por %p163, %p164
    %p166 = scmp.le.s32.totalorder 1, %s12
    %p167 = scmp.lt.s32.totalorder %s12, 29
    %p168 = pnand %p166, %p167
    %p169 = pneg %p168
    // Predicated region
    $region9: #{matmul_bias_stats.1} parent=5 // pred_check
      _
    $region10: #{matmul_bias_stats.1} parent=5 // pred_check_branch
      %171 = sbr.rel (%p168) target = $region12
    $region11: #{matmul_bias_stats.1} parent=5 // pred_region
      %s172 = ssub.s32 %s12, 1
      // Predicated region
      $region13: #{matmul_bias_stats.1} parent=11 // pred_check
        %p173 = pneg %p59
      $region14: #{matmul_bias_stats.1} parent=11 // pred_check_branch
        %175 = sbr.rel (%p173) target = $region16
      $region15: #{matmul_bias_stats.1} parent=11 // pred_region
        _
      $region16: #{matmul_bias_stats.1} parent=11 // pred_fallthru
        _
      // Predicated region
      $region17: #{matmul_bias_stats.1} parent=11 // pred_check
        %p176 = pneg %p80
      $region18: #{matmul_bias_stats.1} parent=11 // pred_check_branch
        %178 = sbr.rel (%p176) target = $region20
      $region19: #{matmul_bias_stats.1} parent=11 // pred_region
        _
      $region20: #{matmul_bias_stats.1} parent=11 // pred_fallthru
        _
    $region12: #{matmul_bias_stats.1} parent=5 // pred_fallthru
      _
    %p179 = scmp.lt.s32.totalorder %s12, 28
    // Predicated region
    $region21: #{matmul_bias_stats.1} parent=5 // pred_check
      %p180 = pneg %p179
    $region22: #{matmul_bias_stats.1} parent=5 // pred_check_branch
      %182 = sbr.rel (%p180) target = $region24
    $region23: #{matmul_bias_stats.1} parent=5 // pred_region
      // Predicated region
      $region25: #{matmul_bias_stats.1} parent=23 // pred_check
        %p183 = pneg %p32
      $region26: #{matmul_bias_stats.1} parent=23 // pred_check_branch
        %185 = sbr.rel (%p183) target = $region28
      $region27: #{matmul_bias_stats.1} parent=23 // pred_region
        %s186 = smul.u32 112, %s12
        %p187 = scmp.lt.s32.totalorder %s186, 3135
        %s188 = scalar_select %p187, %s186, 3135
        %s189 = smul.addr %s188, 2
        %s190 = smul.addr %s189, 4
        %s191 = scalar_lea.vmem %s0, %s190
        %s192 = smul.u32 112, %s12
      $region28: #{matmul_bias_stats.1} parent=23 // pred_fallthru
        _
    $region24: #{matmul_bias_stats.1} parent=5 // pred_fallthru
      _
    %p193 = scmp.le.s32.totalorder 1, %s12
    %p194 = scmp.lt.s32.totalorder %s12, 29
    %p195 = pnand %p193, %p194
    %p196 = pneg %p195
    // Predicated region
    $region29: #{matmul_bias_stats.1} parent=5 // pred_check
      _
    $region30: #{matmul_bias_stats.1} parent=5 // pred_check_branch
      %198 = sbr.rel (%p195) target = $region32
    $region31: #{matmul_bias_stats.1} parent=5 // pred_region
      %s199 = ssub.s32 %s12, 1
      %s200 = smul.u32 112, %s17
      %p201 = scmp.lt.s32.totalorder %s200, 3135
      %s202 = scalar_select %p201, %s200, 3135
      %s203 = smul.addr %s202, 2
      %s204 = smul.addr %s203, 4
      %s205 = scalar_lea.vmem %s0, %s204
      %p206 = pneg %p38
      %p207 = pneg %p35
      %p208 = pneg %p59
      %p209 = pneg %p56
      %p210 = pneg %p80
      %p211 = pneg %p77
      %p212 = pneg %p106
      %p213 = pneg %p103
      %s214 = smul.u32 112, %s17
      %p215 = scmp.lt.s32.totalorder %s214, 3135
      %s216 = scalar_select %p215, %s214, 3135
      %s217 = smul.addr %s216, 4
      %s218 = scalar_lea.vmem %s3, %s217
      %p219 = pneg %p132
      %p220 = pneg %p129
      %p221 = scmp.lt.s32.totalorder %s17, 27
      %s222 = scalar_select %p221, %s17, 27
      %s223 = scalar_lea.vmem %s4, %s222
      %p224 = pneg %p158
      %p225 = pneg %p155
      %p226 = scmp.lt.s32.totalorder %s17, 27
      %s227 = scalar_select %p226, %s17, 27
      %s228 = scalar_lea.vmem %s5, %s227
      %s229 = smul.u32 112, %s17
      %p230 = scmp.lt.s32.totalorder %s229, 3135
      %s231 = scalar_select %p230, %s229, 3135
      %s232 = smul.addr %s231, 2
      %s233 = smul.addr %s232, 4
      %s234 = scalar_lea.vmem %s0, %s233
      %s235 = smul.u32 112, %s17
      %s236 = smul.u32 112, %s17
      %p237 = scmp.lt.s32.totalorder %s236, 3135
      %s238 = scalar_select %p237, %s236, 3135
      %s239 = smul.addr %s238, 4
      %s240 = scalar_lea.vmem %s3, %s239
      %s241 = smul.u32 112, %s17
      %p242 = scmp.lt.s32.totalorder %s17, 27
      %s243 = scalar_select %p242, %s17, 27
      %s244 = scalar_lea.vmem %s4, %s243
      %p245 = scmp.lt.s32.totalorder %s17, 27
      %s246 = scalar_select %p245, %s17, 27
      %s247 = scalar_lea.vmem %s5, %s246
      %v249 = vld [vmem:[%s234] sm:$0xff]
      %v250 = vld [vmem:[%s234 + $0x8] sm:$0xff]
      %v251 = vld [vmem:[%s234 + $0x10] sm:$0xff]
      %v252 = vld [vmem:[%s234 + $0x18] sm:$0xff]
      %v253 = vld [vmem:[%s234 + $0x20] sm:$0xff]
      %v254 = vld [vmem:[%s234 + $0x28] sm:$0xff]
      %v255 = vld [vmem:[%s234 + $0x30] sm:$0xff]
      %v256 = vld [vmem:[%s234 + $0x38] sm:$0xff]
      %v257 = vld [vmem:[%s234 + $0x40] sm:$0xff]
      %v258 = vld [vmem:[%s234 + $0x48] sm:$0xff]
      %v259 = vld [vmem:[%s234 + $0x50] sm:$0xff]
      %v260 = vld [vmem:[%s234 + $0x58] sm:$0xff]
      %v261 = vld [vmem:[%s234 + $0x60] sm:$0xff]
      %v262 = vld [vmem:[%s234 + $0x68] sm:$0xff]
      %v263 = vld [vmem:[%s234 + $0x70] sm:$0xff]
      %v264 = vld [vmem:[%s234 + $0x78] sm:$0xff]
      %v265 = vld [vmem:[%s234 + $0x80] sm:$0xff]
      %v266 = vld [vmem:[%s234 + $0x88] sm:$0xff]
      %v267 = vld [vmem:[%s234 + $0x90] sm:$0xff]
      %v268 = vld [vmem:[%s234 + $0x98] sm:$0xff]
      %v269 = vld [vmem:[%s234 + $0xa0] sm:$0xff]
      %v270 = vld [vmem:[%s234 + $0xa8] sm:$0xff]
      %v271 = vld [vmem:[%s234 + $0xb0] sm:$0xff]
      %v272 = vld [vmem:[%s234 + $0xb8] sm:$0xff]
      %v273 = vld [vmem:[%s234 + $0xc0] sm:$0xff]
      %v274 = vld [vmem:[%s234 + $0xc8] sm:$0xff]
      %v275 = vld [vmem:[%s234 + $0xd0] sm:$0xff]
      %v276 = vld [vmem:[%s234 + $0xd8] sm:$0xff]
      %v277 = vld [vmem:[%s234 + $0xe0] sm:$0xff]
      %v278 = vld [vmem:[%s234 + $0xe8] sm:$0xff]
      %v279 = vld [vmem:[%s234 + $0xf0] sm:$0xff]
      %v280 = vld [vmem:[%s234 + $0xf8] sm:$0xff]
      %v281 = vld [vmem:[%s234 + $0x100] sm:$0xff]
      %v282 = vld [vmem:[%s234 + $0x108] sm:$0xff]
      %v283 = vld [vmem:[%s234 + $0x110] sm:$0xff]
      %v284 = vld [vmem:[%s234 + $0x118] sm:$0xff]
      %v285 = vld [vmem:[%s234 + $0x120] sm:$0xff]
      %v286 = vld [vmem:[%s234 + $0x128] sm:$0xff]
      %v287 = vld [vmem:[%s234 + $0x130] sm:$0xff]
      %v288 = vld [vmem:[%s234 + $0x138] sm:$0xff]
      %v289 = vld [vmem:[%s234 + $0x140] sm:$0xff]
      %v290 = vld [vmem:[%s234 + $0x148] sm:$0xff]
      %v291 = vld [vmem:[%s234 + $0x150] sm:$0xff]
      %v292 = vld [vmem:[%s234 + $0x158] sm:$0xff]
      %v293 = vld [vmem:[%s234 + $0x160] sm:$0xff]
      %v294 = vld [vmem:[%s234 + $0x168] sm:$0xff]
      %v295 = vld [vmem:[%s234 + $0x170] sm:$0xff]
      %v296 = vld [vmem:[%s234 + $0x178] sm:$0xff]
      %v297 = vld [vmem:[%s234 + $0x180] sm:$0xff]
      %v298 = vld [vmem:[%s234 + $0x188] sm:$0xff]
      %v299 = vld [vmem:[%s234 + $0x190] sm:$0xff]
      %v300 = vld [vmem:[%s234 + $0x198] sm:$0xff]
      %v301 = vld [vmem:[%s234 + $0x1a0] sm:$0xff]
      %v302 = vld [vmem:[%s234 + $0x1a8] sm:$0xff]
      %v303 = vld [vmem:[%s234 + $0x1b0] sm:$0xff]
      %v304 = vld [vmem:[%s234 + $0x1b8] sm:$0xff]
      %v305 = vld [vmem:[%s234 + $0x1c0] sm:$0xff]
      %v306 = vld [vmem:[%s234 + $0x1c8] sm:$0xff]
      %v307 = vld [vmem:[%s234 + $0x1d0] sm:$0xff]
      %v308 = vld [vmem:[%s234 + $0x1d8] sm:$0xff]
      %v309 = vld [vmem:[%s234 + $0x1e0] sm:$0xff]
      %v310 = vld [vmem:[%s234 + $0x1e8] sm:$0xff]
      %v311 = vld [vmem:[%s234 + $0x1f0] sm:$0xff]
      %v312 = vld [vmem:[%s234 + $0x1f8] sm:$0xff]
      %v313 = vld [vmem:[%s234 + $0x200] sm:$0xff]
      %v314 = vld [vmem:[%s234 + $0x208] sm:$0xff]
      %v315 = vld [vmem:[%s234 + $0x210] sm:$0xff]
      %v316 = vld [vmem:[%s234 + $0x218] sm:$0xff]
      %v317 = vld [vmem:[%s234 + $0x220] sm:$0xff]
      %v318 = vld [vmem:[%s234 + $0x228] sm:$0xff]
      %v319 = vld [vmem:[%s234 + $0x230] sm:$0xff]
      %v320 = vld [vmem:[%s234 + $0x238] sm:$0xff]
      %v321 = vld [vmem:[%s234 + $0x240] sm:$0xff]
      %v322 = vld [vmem:[%s234 + $0x248] sm:$0xff]
      %v323 = vld [vmem:[%s234 + $0x250] sm:$0xff]
      %v324 = vld [vmem:[%s234 + $0x258] sm:$0xff]
      %v325 = vld [vmem:[%s234 + $0x260] sm:$0xff]
      %v326 = vld [vmem:[%s234 + $0x268] sm:$0xff]
      %v327 = vld [vmem:[%s234 + $0x270] sm:$0xff]
      %v328 = vld [vmem:[%s234 + $0x278] sm:$0xff]
      %v329 = vld [vmem:[%s234 + $0x280] sm:$0xff]
      %v330 = vld [vmem:[%s234 + $0x288] sm:$0xff]
      %v331 = vld [vmem:[%s234 + $0x290] sm:$0xff]
      %v332 = vld [vmem:[%s234 + $0x298] sm:$0xff]
      %v333 = vld [vmem:[%s234 + $0x2a0] sm:$0xff]
      %v334 = vld [vmem:[%s234 + $0x2a8] sm:$0xff]
      %v335 = vld [vmem:[%s234 + $0x2b0] sm:$0xff]
      %v336 = vld [vmem:[%s234 + $0x2b8] sm:$0xff]
      %v337 = vld [vmem:[%s234 + $0x2c0] sm:$0xff]
      %v338 = vld [vmem:[%s234 + $0x2c8] sm:$0xff]
      %v339 = vld [vmem:[%s234 + $0x2d0] sm:$0xff]
      %v340 = vld [vmem:[%s234 + $0x2d8] sm:$0xff]
      %v341 = vld [vmem:[%s234 + $0x2e0] sm:$0xff]
      %v342 = vld [vmem:[%s234 + $0x2e8] sm:$0xff]
      %v343 = vld [vmem:[%s234 + $0x2f0] sm:$0xff]
      %v344 = vld [vmem:[%s234 + $0x2f8] sm:$0xff]
      %v345 = vld [vmem:[%s234 + $0x300] sm:$0xff]
      %v346 = vld [vmem:[%s234 + $0x308] sm:$0xff]
      %v347 = vld [vmem:[%s234 + $0x310] sm:$0xff]
      %v348 = vld [vmem:[%s234 + $0x318] sm:$0xff]
      %v349 = vld [vmem:[%s234 + $0x320] sm:$0xff]
      %v350 = vld [vmem:[%s234 + $0x328] sm:$0xff]
      %v351 = vld [vmem:[%s234 + $0x330] sm:$0xff]
      %v352 = vld [vmem:[%s234 + $0x338] sm:$0xff]
      %v353 = vld [vmem:[%s234 + $0x340] sm:$0xff]
      %v354 = vld [vmem:[%s234 + $0x348] sm:$0xff]
      %v355 = vld [vmem:[%s234 + $0x350] sm:$0xff]
      %v356 = vld [vmem:[%s234 + $0x358] sm:$0xff]
      %v357 = vld [vmem:[%s234 + $0x360] sm:$0xff]
      %v358 = vld [vmem:[%s234 + $0x368] sm:$0xff]
      %v359 = vld [vmem:[%s234 + $0x370] sm:$0xff]
      %v360 = vld [vmem:[%s234 + $0x378] sm:$0xff]
      %v361 = vld [vmem:[%s1] sm:$0xf]
      %v362 = vld [vmem:[%s1 + $0x4] sm:$0xf]
      %v363 = vld [vmem:[%s1 + $0x8] sm:$0xf]
      %v364 = vld [vmem:[%s1 + $0xc] sm:$0xf]
      %v365 = vld [vmem:[%s1 + $0x10] sm:$0xf]
      %v366 = vld [vmem:[%s1 + $0x14] sm:$0xf]
      %v367 = vld [vmem:[%s1 + $0x18] sm:$0xf]
      %v368 = vld [vmem:[%s1 + $0x1c] sm:$0xf]
      %v369 = vld [vmem:[%s1 + $0x20] sm:$0xf]
      %v370 = vld [vmem:[%s1 + $0x24] sm:$0xf]
      %v371 = vld [vmem:[%s1 + $0x28] sm:$0xf]
      %v372 = vld [vmem:[%s1 + $0x2c] sm:$0xf]
      %v373 = vld [vmem:[%s1 + $0x30] sm:$0xf]
      %v374 = vld [vmem:[%s1 + $0x34] sm:$0xf]
      %v375 = vld [vmem:[%s1 + $0x38] sm:$0xf]
      %v376 = vld [vmem:[%s1 + $0x3c] sm:$0xf]
      %v377 = vld [vmem:[%s1 + $0x40] sm:$0xf]
      %v378 = vld [vmem:[%s1 + $0x44] sm:$0xf]
      %v379 = vld [vmem:[%s1 + $0x48] sm:$0x3]
      %v380 = vld [vmem:[%s2] sm:$0x1]
      %v382 = vlaneseq
      %v383 = vshrl.u32 %v382, 7
      %v384 = vsub.s32 0, %v383
      %v385 = vrot.slane %v380, %v384
      %v499 = vunpack.c.l.b16 %v249
      %v500 = vunpack.c.h.b16 %v249
      %v501 = vunpack.c.l.b16 %v250
      %v502 = vunpack.c.h.b16 %v250
      %v503 = vunpack.c.l.b16 %v251
      %v504 = vunpack.c.h.b16 %v251
      %v505 = vunpack.c.l.b16 %v252
      %v506 = vunpack.c.h.b16 %v252
      %v507 = vunpack.c.l.b16 %v253
      %v508 = vunpack.c.h.b16 %v253
      %v509 = vunpack.c.l.b16 %v254
      %v510 = vunpack.c.h.b16 %v254
      %v511 = vunpack.c.l.b16 %v255
      %v512 = vunpack.c.h.b16 %v255
      %v513 = vunpack.c.l.b16 %v256
      %v514 = vunpack.c.h.b16 %v256
      %v515 = vunpack.c.l.b16 %v257
      %v516 = vunpack.c.h.b16 %v257
      %v517 = vunpack.c.l.b16 %v258
      %v518 = vunpack.c.h.b16 %v258
      %v519 = vunpack.c.l.b16 %v259
      %v520 = vunpack.c.h.b16 %v259
      %v521 = vunpack.c.l.b16 %v260
      %v522 = vunpack.c.h.b16 %v260
      %v523 = vunpack.c.l.b16 %v261
      %v524 = vunpack.c.h.b16 %v261
      %v525 = vunpack.c.l.b16 %v262
      %v526 = vunpack.c.h.b16 %v262
      %v527 = vunpack.c.l.b16 %v263
      %v528 = vunpack.c.h.b16 %v263
      %v529 = vunpack.c.l.b16 %v264
      %v530 = vunpack.c.h.b16 %v264
      %v531 = vunpack.c.l.b16 %v265
      %v532 = vunpack.c.h.b16 %v265
      %v533 = vunpack.c.l.b16 %v266
      %v534 = vunpack.c.h.b16 %v266
      %v535 = vunpack.c.l.b16 %v267
      %v536 = vunpack.c.h.b16 %v267
      %v537 = vunpack.c.l.b16 %v268
      %v538 = vunpack.c.h.b16 %v268
      %v539 = vunpack.c.l.b16 %v269
      %v540 = vunpack.c.h.b16 %v269
      %v541 = vunpack.c.l.b16 %v270
      %v542 = vunpack.c.h.b16 %v270
      %v543 = vunpack.c.l.b16 %v271
      %v544 = vunpack.c.h.b16 %v271
      %v545 = vunpack.c.l.b16 %v272
      %v546 = vunpack.c.h.b16 %v272
      %v547 = vunpack.c.l.b16 %v273
      %v548 = vunpack.c.h.b16 %v273
      %v549 = vunpack.c.l.b16 %v274
      %v550 = vunpack.c.h.b16 %v274
      %v551 = vunpack.c.l.b16 %v275
      %v552 = vunpack.c.h.b16 %v275
      %v553 = vunpack.c.l.b16 %v276
      %v554 = vunpack.c.h.b16 %v276
      %v555 = vunpack.c.l.b16 %v277
      %v556 = vunpack.c.h.b16 %v277
      %v557 = vunpack.c.l.b16 %v278
      %v558 = vunpack.c.h.b16 %v278
      %v559 = vunpack.c.l.b16 %v279
      %v560 = vunpack.c.h.b16 %v279
      %v561 = vunpack.c.l.b16 %v280
      %v562 = vunpack.c.h.b16 %v280
      %v563 = vunpack.c.l.b16 %v281
      %v564 = vunpack.c.h.b16 %v281
      %v565 = vunpack.c.l.b16 %v282
      %v566 = vunpack.c.h.b16 %v282
      %v567 = vunpack.c.l.b16 %v283
      %v568 = vunpack.c.h.b16 %v283
      %v569 = vunpack.c.l.b16 %v284
      %v570 = vunpack.c.h.b16 %v284
      %v571 = vunpack.c.l.b16 %v285
      %v572 = vunpack.c.h.b16 %v285
      %v573 = vunpack.c.l.b16 %v286
      %v574 = vunpack.c.h.b16 %v286
      %v575 = vunpack.c.l.b16 %v287
      %v576 = vunpack.c.h.b16 %v287
      %v577 = vunpack.c.l.b16 %v288
      %v578 = vunpack.c.h.b16 %v288
      %v579 = vunpack.c.l.b16 %v289
      %v580 = vunpack.c.h.b16 %v289
      %v581 = vunpack.c.l.b16 %v290
      %v582 = vunpack.c.h.b16 %v290
      %v583 = vunpack.c.l.b16 %v291
      %v584 = vunpack.c.h.b16 %v291
      %v585 = vunpack.c.l.b16 %v292
      %v586 = vunpack.c.h.b16 %v292
      %v587 = vunpack.c.l.b16 %v293
      %v588 = vunpack.c.h.b16 %v293
      %v589 = vunpack.c.l.b16 %v294
      %v590 = vunpack.c.h.b16 %v294
      %v591 = vunpack.c.l.b16 %v295
      %v592 = vunpack.c.h.b16 %v295
      %v593 = vunpack.c.l.b16 %v296
      %v594 = vunpack.c.h.b16 %v296
      %v595 = vunpack.c.l.b16 %v297
      %v596 = vunpack.c.h.b16 %v297
      %v597 = vunpack.c.l.b16 %v298
      %v598 = vunpack.c.h.b16 %v298
      %v599 = vunpack.c.l.b16 %v299
      %v600 = vunpack.c.h.b16 %v299
      %v601 = vunpack.c.l.b16 %v300
      %v602 = vunpack.c.h.b16 %v300
      %v603 = vunpack.c.l.b16 %v301
      %v604 = vunpack.c.h.b16 %v301
      %v605 = vunpack.c.l.b16 %v302
      %v606 = vunpack.c.h.b16 %v302
      %v607 = vunpack.c.l.b16 %v303
      %v608 = vunpack.c.h.b16 %v303
      %v609 = vunpack.c.l.b16 %v304
      %v610 = vunpack.c.h.b16 %v304
      %v611 = vunpack.c.l.b16 %v305
      %v612 = vunpack.c.h.b16 %v305
      %v613 = vunpack.c.l.b16 %v306
      %v614 = vunpack.c.h.b16 %v306
      %v615 = vunpack.c.l.b16 %v307
      %v616 = vunpack.c.h.b16 %v307
      %v617 = vunpack.c.l.b16 %v308
      %v618 = vunpack.c.h.b16 %v308
      %v619 = vunpack.c.l.b16 %v309
      %v620 = vunpack.c.h.b16 %v309
      %v621 = vunpack.c.l.b16 %v310
      %v622 = vunpack.c.h.b16 %v310
      %v623 = vunpack.c.l.b16 %v311
      %v624 = vunpack.c.h.b16 %v311
      %v625 = vunpack.c.l.b16 %v312
      %v626 = vunpack.c.h.b16 %v312
      %v627 = vunpack.c.l.b16 %v313
      %v628 = vunpack.c.h.b16 %v313
      %v629 = vunpack.c.l.b16 %v314
      %v630 = vunpack.c.h.b16 %v314
      %v631 = vunpack.c.l.b16 %v315
      %v632 = vunpack.c.h.b16 %v315
      %v633 = vunpack.c.l.b16 %v316
      %v634 = vunpack.c.h.b16 %v316
      %v635 = vunpack.c.l.b16 %v317
      %v636 = vunpack.c.h.b16 %v317
      %v637 = vunpack.c.l.b16 %v318
      %v638 = vunpack.c.h.b16 %v318
      %v639 = vunpack.c.l.b16 %v319
      %v640 = vunpack.c.h.b16 %v319
      %v641 = vunpack.c.l.b16 %v320
      %v642 = vunpack.c.h.b16 %v320
      %v643 = vunpack.c.l.b16 %v321
      %v644 = vunpack.c.h.b16 %v321
      %v645 = vunpack.c.l.b16 %v322
      %v646 = vunpack.c.h.b16 %v322
      %v647 = vunpack.c.l.b16 %v323
      %v648 = vunpack.c.h.b16 %v323
      %v649 = vunpack.c.l.b16 %v324
      %v650 = vunpack.c.h.b16 %v324
      %v651 = vunpack.c.l.b16 %v325
      %v652 = vunpack.c.h.b16 %v325
      %v653 = vunpack.c.l.b16 %v326
      %v654 = vunpack.c.h.b16 %v326
      %v655 = vunpack.c.l.b16 %v327
      %v656 = vunpack.c.h.b16 %v327
      %v657 = vunpack.c.l.b16 %v328
      %v658 = vunpack.c.h.b16 %v328
      %v659 = vunpack.c.l.b16 %v329
      %v660 = vunpack.c.h.b16 %v329
      %v661 = vunpack.c.l.b16 %v330
      %v662 = vunpack.c.h.b16 %v330
      %v663 = vunpack.c.l.b16 %v331
      %v664 = vunpack.c.h.b16 %v331
      %v665 = vunpack.c.l.b16 %v332
      %v666 = vunpack.c.h.b16 %v332
      %v667 = vunpack.c.l.b16 %v333
      %v668 = vunpack.c.h.b16 %v333
      %v669 = vunpack.c.l.b16 %v334
      %v670 = vunpack.c.h.b16 %v334
      %v671 = vunpack.c.l.b16 %v335
      %v672 = vunpack.c.h.b16 %v335
      %v673 = vunpack.c.l.b16 %v336
      %v674 = vunpack.c.h.b16 %v336
      %v675 = vunpack.c.l.b16 %v337
      %v676 = vunpack.c.h.b16 %v337
      %v677 = vunpack.c.l.b16 %v338
      %v678 = vunpack.c.h.b16 %v338
      %v679 = vunpack.c.l.b16 %v339
      %v680 = vunpack.c.h.b16 %v339
      %v681 = vunpack.c.l.b16 %v340
      %v682 = vunpack.c.h.b16 %v340
      %v683 = vunpack.c.l.b16 %v341
      %v684 = vunpack.c.h.b16 %v341
      %v685 = vunpack.c.l.b16 %v342
      %v686 = vunpack.c.h.b16 %v342
      %v687 = vunpack.c.l.b16 %v343
      %v688 = vunpack.c.h.b16 %v343
      %v689 = vunpack.c.l.b16 %v344
      %v690 = vunpack.c.h.b16 %v344
      %v691 = vunpack.c.l.b16 %v345
      %v692 = vunpack.c.h.b16 %v345
      %v693 = vunpack.c.l.b16 %v346
      %v694 = vunpack.c.h.b16 %v346
      %v695 = vunpack.c.l.b16 %v347
      %v696 = vunpack.c.h.b16 %v347
      %v697 = vunpack.c.l.b16 %v348
      %v698 = vunpack.c.h.b16 %v348
      %v699 = vunpack.c.l.b16 %v349
      %v700 = vunpack.c.h.b16 %v349
      %v701 = vunpack.c.l.b16 %v350
      %v702 = vunpack.c.h.b16 %v350
      %v703 = vunpack.c.l.b16 %v351
      %v704 = vunpack.c.h.b16 %v351
      %v705 = vunpack.c.l.b16 %v352
      %v706 = vunpack.c.h.b16 %v352
      %v707 = vunpack.c.l.b16 %v353
      %v708 = vunpack.c.h.b16 %v353
      %v709 = vunpack.c.l.b16 %v354
      %v710 = vunpack.c.h.b16 %v354
      %v711 = vunpack.c.l.b16 %v355
      %v712 = vunpack.c.h.b16 %v355
      %v713 = vunpack.c.l.b16 %v356
      %v714 = vunpack.c.h.b16 %v356
      %v715 = vunpack.c.l.b16 %v357
      %v716 = vunpack.c.h.b16 %v357
      %v717 = vunpack.c.l.b16 %v358
      %v718 = vunpack.c.h.b16 %v358
      %v719 = vunpack.c.l.b16 %v359
      %v720 = vunpack.c.h.b16 %v359
      %v721 = vunpack.c.l.b16 %v360
      %v722 = vunpack.c.h.b16 %v360
      %v723 = vpack.c.b16 %v501, %v499
      %v724 = vpack.c.b16 %v502, %v500
      %v725 = vpack.c.b16 %v505, %v503
      %v726 = vpack.c.b16 %v506, %v504
      %v727 = vpack.c.b16 %v509, %v507
      %v728 = vpack.c.b16 %v510, %v508
      %v729 = vpack.c.b16 %v513, %v511
      %v730 = vpack.c.b16 %v514, %v512
      %v731 = vpack.c.b16 %v517, %v515
      %v732 = vpack.c.b16 %v518, %v516
      %v733 = vpack.c.b16 %v521, %v519
      %v734 = vpack.c.b16 %v522, %v520
      %v735 = vpack.c.b16 %v525, %v523
      %v736 = vpack.c.b16 %v526, %v524
      %v737 = vpack.c.b16 %v529, %v527
      %v738 = vpack.c.b16 %v530, %v528
      %v739 = vpack.c.b16 %v533, %v531
      %v740 = vpack.c.b16 %v534, %v532
      %v741 = vpack.c.b16 %v537, %v535
      %v742 = vpack.c.b16 %v538, %v536
      %v743 = vpack.c.b16 %v541, %v539
      %v744 = vpack.c.b16 %v542, %v540
      %v745 = vpack.c.b16 %v545, %v543
      %v746 = vpack.c.b16 %v546, %v544
      %v747 = vpack.c.b16 %v549, %v547
      %v748 = vpack.c.b16 %v550, %v548
      %v749 = vpack.c.b16 %v553, %v551
      %v750 = vpack.c.b16 %v554, %v552
      %v751 = vpack.c.b16 %v557, %v555
      %v752 = vpack.c.b16 %v558, %v556
      %v753 = vpack.c.b16 %v561, %v559
      %v754 = vpack.c.b16 %v562, %v560
      %v755 = vpack.c.b16 %v565, %v563
      %v756 = vpack.c.b16 %v566, %v564
      %v757 = vpack.c.b16 %v569, %v567
      %v758 = vpack.c.b16 %v570, %v568
      %v759 = vpack.c.b16 %v573, %v571
      %v760 = vpack.c.b16 %v574, %v572
      %v761 = vpack.c.b16 %v577, %v575
      %v762 = vpack.c.b16 %v578, %v576
      %v763 = vpack.c.b16 %v581, %v579
      %v764 = vpack.c.b16 %v582, %v580
      %v765 = vpack.c.b16 %v585, %v583
      %v766 = vpack.c.b16 %v586, %v584
      %v767 = vpack.c.b16 %v589, %v587
      %v768 = vpack.c.b16 %v590, %v588
      %v769 = vpack.c.b16 %v593, %v591
      %v770 = vpack.c.b16 %v594, %v592
      %v771 = vpack.c.b16 %v597, %v595
      %v772 = vpack.c.b16 %v598, %v596
      %v773 = vpack.c.b16 %v601, %v599
      %v774 = vpack.c.b16 %v602, %v600
      %v775 = vpack.c.b16 %v605, %v603
      %v776 = vpack.c.b16 %v606, %v604
      %v777 = vpack.c.b16 %v609, %v607
      %v778 = vpack.c.b16 %v610, %v608
      %v779 = vpack.c.b16 %v613, %v611
      %v780 = vpack.c.b16 %v614, %v612
      %v781 = vpack.c.b16 %v617, %v615
      %v782 = vpack.c.b16 %v618, %v616
      %v783 = vpack.c.b16 %v621, %v619
      %v784 = vpack.c.b16 %v622, %v620
      %v785 = vpack.c.b16 %v625, %v623
      %v786 = vpack.c.b16 %v626, %v624
      %v787 = vpack.c.b16 %v629, %v627
      %v788 = vpack.c.b16 %v630, %v628
      %v789 = vpack.c.b16 %v633, %v631
      %v790 = vpack.c.b16 %v634, %v632
      %v791 = vpack.c.b16 %v637, %v635
      %v792 = vpack.c.b16 %v638, %v636
      %v793 = vpack.c.b16 %v641, %v639
      %v794 = vpack.c.b16 %v642, %v640
      %v795 = vpack.c.b16 %v645, %v643
      %v796 = vpack.c.b16 %v646, %v644
      %v797 = vpack.c.b16 %v649, %v647
      %v798 = vpack.c.b16 %v650, %v648
      %v799 = vpack.c.b16 %v653, %v651
      %v800 = vpack.c.b16 %v654, %v652
      %v801 = vpack.c.b16 %v657, %v655
      %v802 = vpack.c.b16 %v658, %v656
      %v803 = vpack.c.b16 %v661, %v659
      %v804 = vpack.c.b16 %v662, %v660
      %v805 = vpack.c.b16 %v665, %v663
      %v806 = vpack.c.b16 %v666, %v664
      %v807 = vpack.c.b16 %v669, %v667
      %v808 = vpack.c.b16 %v670, %v668
      %v809 = vpack.c.b16 %v673, %v671
      %v810 = vpack.c.b16 %v674, %v672
      %v811 = vpack.c.b16 %v677, %v675
      %v812 = vpack.c.b16 %v678, %v676
      %v813 = vpack.c.b16 %v681, %v679
      %v814 = vpack.c.b16 %v682, %v680
      %v815 = vpack.c.b16 %v685, %v683
      %v816 = vpack.c.b16 %v686, %v684
      %v817 = vpack.c.b16 %v689, %v687
      %v818 = vpack.c.b16 %v690, %v688
      %v819 = vpack.c.b16 %v693, %v691
      %v820 = vpack.c.b16 %v694, %v692
      %v821 = vpack.c.b16 %v697, %v695
      %v822 = vpack.c.b16 %v698, %v696
      %v823 = vpack.c.b16 %v701, %v699
      %v824 = vpack.c.b16 %v702, %v700
      %v825 = vpack.c.b16 %v705, %v703
      %v826 = vpack.c.b16 %v706, %v704
      %v827 = vpack.c.b16 %v709, %v707
      %v828 = vpack.c.b16 %v710, %v708
      %v829 = vpack.c.b16 %v713, %v711
      %v830 = vpack.c.b16 %v714, %v712
      %v831 = vpack.c.b16 %v717, %v715
      %v832 = vpack.c.b16 %v718, %v716
      %v833 = vpack.c.b16 %v721, %v719
      %v834 = vpack.c.b16 %v722, %v720
      %v910 = vunpack.c.l.b16 %v361
      %v911 = vunpack.c.l.b16 %v362
      %v912 = vunpack.c.l.b16 %v363
      %v913 = vunpack.c.l.b16 %v364
      %v914 = vunpack.c.l.b16 %v365
      %v915 = vunpack.c.l.b16 %v366
      %v916 = vunpack.c.l.b16 %v367
      %v917 = vunpack.c.l.b16 %v368
      %v918 = vunpack.c.l.b16 %v369
      %v919 = vunpack.c.l.b16 %v370
      %v920 = vunpack.c.l.b16 %v371
      %v921 = vunpack.c.l.b16 %v372
      %v922 = vunpack.c.l.b16 %v373
      %v923 = vunpack.c.l.b16 %v374
      %v924 = vunpack.c.l.b16 %v375
      %v925 = vunpack.c.l.b16 %v376
      %v926 = vunpack.c.l.b16 %v377
      %v927 = vunpack.c.l.b16 %v378
      %v928 = vunpack.c.l.b16 %v379
      %v929 = vpack.c.b16 %v911, %v910
      %v930 = vpack.c.b16 %v913, %v912
      %v931 = vpack.c.b16 %v915, %v914
      %v932 = vpack.c.b16 %v917, %v916
      %v933 = vpack.c.b16 %v919, %v918
      %v934 = vpack.c.b16 %v921, %v920
      %v935 = vpack.c.b16 %v923, %v922
      %v936 = vpack.c.b16 %v925, %v924
      %v937 = vpack.c.b16 %v927, %v926
      %v938 = vpack.c.b16 %v928, %v928
      %vm948 = vcmask 154624
      %v950 = vsel %vm948, %v724, 0
      %v953 = vsel %vm948, %v726, 0
      %v956 = vsel %vm948, %v728, 0
      %v959 = vsel %vm948, %v730, 0
      %v962 = vsel %vm948, %v732, 0
      %v965 = vsel %vm948, %v734, 0
      %v968 = vsel %vm948, %v736, 0
      %v971 = vsel %vm948, %v738, 0
      %v974 = vsel %vm948, %v740, 0
      %v977 = vsel %vm948, %v742, 0
      %v980 = vsel %vm948, %v744, 0
      %v983 = vsel %vm948, %v746, 0
      %v986 = vsel %vm948, %v748, 0
      %v989 = vsel %vm948, %v750, 0
      %v992 = vsel %vm948, %v752, 0
      %v995 = vsel %vm948, %v754, 0
      %v998 = vsel %vm948, %v756, 0
      %v1001 = vsel %vm948, %v758, 0
      %v1004 = vsel %vm948, %v760, 0
      %v1007 = vsel %vm948, %v762, 0
      %v1010 = vsel %vm948, %v764, 0
      %v1013 = vsel %vm948, %v766, 0
      %v1016 = vsel %vm948, %v768, 0
      %v1019 = vsel %vm948, %v770, 0
      %v1022 = vsel %vm948, %v772, 0
      %v1025 = vsel %vm948, %v774, 0
      %v1028 = vsel %vm948, %v776, 0
      %v1031 = vsel %vm948, %v778, 0
      %v1034 = vsel %vm948, %v780, 0
      %v1037 = vsel %vm948, %v782, 0
      %v1040 = vsel %vm948, %v784, 0
      %v1043 = vsel %vm948, %v786, 0
      %v1046 = vsel %vm948, %v788, 0
      %v1049 = vsel %vm948, %v790, 0
      %v1052 = vsel %vm948, %v792, 0
      %v1055 = vsel %vm948, %v794, 0
      %v1058 = vsel %vm948, %v796, 0
      %v1061 = vsel %vm948, %v798, 0
      %v1064 = vsel %vm948, %v800, 0
      %v1067 = vsel %vm948, %v802, 0
      %v1070 = vsel %vm948, %v804, 0
      %v1073 = vsel %vm948, %v806, 0
      %v1076 = vsel %vm948, %v808, 0
      %v1079 = vsel %vm948, %v810, 0
      %v1082 = vsel %vm948, %v812, 0
      %v1085 = vsel %vm948, %v814, 0
      %v1088 = vsel %vm948, %v816, 0
      %v1091 = vsel %vm948, %v818, 0
      %v1094 = vsel %vm948, %v820, 0
      %v1097 = vsel %vm948, %v822, 0
      %v1100 = vsel %vm948, %v824, 0
      %v1103 = vsel %vm948, %v826, 0
      %v1106 = vsel %vm948, %v828, 0
      %v1109 = vsel %vm948, %v830, 0
      %v1112 = vsel %vm948, %v832, 0
      %v1115 = vsel %vm948, %v834, 0
      %vm1117 = vcmask 1040384
      %vm1118 = vcmask 1041408
      %v1119 = vsel %vm1117, 4294967295, 65535
      %v1120 = vsel %vm1118, %v1119, 0
      %v1122 = vand.u32 %v938, %v1120
      %1124 = vmatprep.subr.bf16.mxu0 0
      %1125 = vmatpush1.bf16.msra.mxu0 %v929
      %1126 = vmatprep.subr.bf16.mxu0 0
      %1127 = vmatpush1.bf16.msra.mxu0 %v930
      %1128 = vmatprep.subr.bf16.mxu0 0
      %1129 = vmatpush1.bf16.msra.mxu0 %v931
      %1130 = vmatprep.subr.bf16.mxu0 0
      %1131 = vmatpush1.bf16.msra.mxu0 %v932
      %1132 = vmatprep.subr.bf16.mxu0 0
      %1133 = vmatpush1.bf16.msra.mxu0 %v933
      %1134 = vmatprep.subr.bf16.mxu0 0
      %1135 = vmatpush1.bf16.msra.mxu0 %v934
      %1136 = vmatprep.subr.bf16.mxu0 0
      %1137 = vmatpush1.bf16.msra.mxu0 %v935
      %1138 = vmatprep.subr.bf16.mxu0 0
      %1139 = vmatpush1.bf16.msra.mxu0 %v936
      %1140 = vmatprep.subr.bf16.mxu0 0
      %1141 = vmatpush1.bf16.msra.mxu0 %v937
      %1142 = vmatprep.subr.bf16.mxu0 0
      %1143 = vmatpush1.bf16.msra.mxu0 %v1122
      %1144 = vmatprep.subr.bf16.mxu0 0
      %1145 = vmatpush1.bf16.msra.mxu0 0
      %1146 = vmatprep.subr.bf16.mxu0 0
      %1147 = vmatpush1.bf16.msra.mxu0 0
      %1148 = vmatprep.subr.bf16.mxu0 0
      %1149 = vmatpush1.bf16.msra.mxu0 0
      %1150 = vmatprep.subr.bf16.mxu0 0
      %1151 = vmatpush1.bf16.msra.mxu0 0
      %1152 = vmatprep.subr.bf16.mxu0 0
      %1153 = vmatpush1.bf16.msra.mxu0 0
      %1154 = vmatprep.subr.bf16.mxu0 0
      %1155 = vmatpush1.bf16.msra.mxu0 0
      %1156 = vmatprep.mubr.bf16.mxu0 %v950
      %1157 = vmatmul.mubr.bf16.gmra.mrb[0].mxu0 %v723
      %v1158 = vpop.f32.mrb[0].mxu0
      %v1159 = vadd.f32 %v385, %v1158
      %v1160 = vpop.f32.mrb[0].mxu0
      %v1161 = vpop.f32.mrb[0].mxu0
      %v1162 = vadd.f32 %v385, %v1161
      %v1163 = vpop.f32.mrb[0].mxu0
      %1164 = vmatprep.mubr.bf16.mxu0 %v953
      %1165 = vmatmul.mubr.bf16.gmra.mrb[0].mxu0 %v725
      %v1166 = vpop.f32.mrb[0].mxu0
      %v1167 = vadd.f32 %v385, %v1166
      %v1168 = vpop.f32.mrb[0].mxu0
      %v1169 = vpop.f32.mrb[0].mxu0
      %v1170 = vadd.f32 %v385, %v1169
      %v1171 = vpop.f32.mrb[0].mxu0
      %1172 = vmatprep.mubr.bf16.mxu0 %v956
      %1173 = vmatmul.mubr.bf16.gmra.mrb[0].mxu0 %v727
      %v1174 = vpop.f32.mrb[0].mxu0
      %v1175 = vadd.f32 %v385, %v1174
      %v1176 = vpop.f32.mrb[0].mxu0
      %v1177 = vpop.f32.mrb[0].mxu0
      %v1178 = vadd.f32 %v385, %v1177
      %v1179 = vpop.f32.mrb[0].mxu0
      %1180 = vmatprep.mubr.bf16.mxu0 %v959
      %1181 = vmatmul.mubr.bf16.gmra.mrb[0].mxu0 %v729
      %v1182 = vpop.f32.mrb[0].mxu0
      %v1183 = vadd.f32 %v385, %v1182
      %v1184 = vpop.f32.mrb[0].mxu0
      %v1185 = vpop.f32.mrb[0].mxu0
      %v1186 = vadd.f32 %v385, %v1185
      %v1187 = vpop.f32.mrb[0].mxu0
      %1188 = vmatprep.mubr.bf16.mxu0 %v962
      %1189 = vmatmul.mubr.bf16.gmra.mrb[0].mxu0 %v731
      %v1190 = vpop.f32.mrb[0].mxu0
      %v1191 = vadd.f32 %v385, %v1190
      %v1192 = vpop.f32.mrb[0].mxu0
      %v1193 = vpop.f32.mrb[0].mxu0
      %v1194 = vadd.f32 %v385, %v1193
      %v1195 = vpop.f32.mrb[0].mxu0
      %1196 = vmatprep.mubr.bf16.mxu0 %v965
      %1197 = vmatmul.mubr.bf16.gmra.mrb[0].mxu0 %v733
      %v1198 = vpop.f32.mrb[0].mxu0
      %v1199 = vadd.f32 %v385, %v1198
      %v1200 = vpop.f32.mrb[0].mxu0
      %v1201 = vpop.f32.mrb[0].mxu0
      %v1202 = vadd.f32 %v385, %v1201
      %v1203 = vpop.f32.mrb[0].mxu0
      %1204 = vmatprep.mubr.bf16.mxu0 %v968
      %1205 = vmatmul.mubr.bf16.gmra.mrb[0].mxu0 %v735
      %v1206 = vpop.f32.mrb[0].mxu0
      %v1207 = vadd.f32 %v385, %v1206
      %v1208 = vpop.f32.mrb[0].mxu0
      %v1209 = vpop.f32.mrb[0].mxu0
      %v1210 = vadd.f32 %v385, %v1209
      %v1211 = vpop.f32.mrb[0].mxu0
      %1212 = vmatprep.mubr.bf16.mxu0 %v971
      %1213 = vmatmul.mubr.bf16.gmra.mrb[0].mxu0 %v737
      %v1214 = vpop.f32.mrb[0].mxu0
      %v1215 = vadd.f32 %v385, %v1214
      %v1216 = vpop.f32.mrb[0].mxu0
      %v1217 = vpop.f32.mrb[0].mxu0
      %v1218 = vadd.f32 %v385, %v1217
      %v1219 = vpop.f32.mrb[0].mxu0
      %1220 = vmatprep.mubr.bf16.mxu0 %v974
      %1221 = vmatmul.mubr.bf16.gmra.mrb[0].mxu0 %v739
      %v1222 = vpop.f32.mrb[0].mxu0
      %v1223 = vadd.f32 %v385, %v1222
      %v1224 = vpop.f32.mrb[0].mxu0
      %v1225 = vpop.f32.mrb[0].mxu0
      %v1226 = vadd.f32 %v385, %v1225
      %v1227 = vpop.f32.mrb[0].mxu0
      %1228 = vmatprep.mubr.bf16.mxu0 %v977
      %1229 = vmatmul.mubr.bf16.gmra.mrb[0].mxu0 %v741
      %v1230 = vpop.f32.mrb[0].mxu0
      %v1231 = vadd.f32 %v385, %v1230
      %v1232 = vpop.f32.mrb[0].mxu0
      %v1233 = vpop.f32.mrb[0].mxu0
      %v1234 = vadd.f32 %v385, %v1233
      %v1235 = vpop.f32.mrb[0].mxu0
      %1236 = vmatprep.mubr.bf16.mxu0 %v980
      %1237 = vmatmul.mubr.bf16.gmra.mrb[0].mxu0 %v743
      %v1238 = vpop.f32.mrb[0].mxu0
      %v1239 = vadd.f32 %v385, %v1238
      %v1240 = vpop.f32.mrb[0].mxu0
      %v1241 = vpop.f32.mrb[0].mxu0
      %v1242 = vadd.f32 %v385, %v1241
      %v1243 = vpop.f32.mrb[0].mxu0
      %1244 = vmatprep.mubr.bf16.mxu0 %v983
      %1245 = vmatmul.mubr.bf16.gmra.mrb[0].mxu0 %v745
      %v1246 = vpop.f32.mrb[0].mxu0
      %v1247 = vadd.f32 %v385, %v1246
      %v1248 = vpop.f32.mrb[0].mxu0
      %v1249 = vpop.f32.mrb[0].mxu0
      %v1250 = vadd.f32 %v385, %v1249
      %v1251 = vpop.f32.mrb[0].mxu0
      %1252 = vmatprep.mubr.bf16.mxu0 %v986
      %1253 = vmatmul.mubr.bf16.gmra.mrb[0].mxu0 %v747
      %v1254 = vpop.f32.mrb[0].mxu0
      %v1255 = vadd.f32 %v385, %v1254
      %v1256 = vpop.f32.mrb[0].mxu0
      %v1257 = vpop.f32.mrb[0].mxu0
      %v1258 = vadd.f32 %v385, %v1257
      %v1259 = vpop.f32.mrb[0].mxu0
      %1260 = vmatprep.mubr.bf16.mxu0 %v989
      %1261 = vmatmul.mubr.bf16.gmra.mrb[0].mxu0 %v749
      %v1262 = vpop.f32.mrb[0].mxu0
      %v1263 = vadd.f32 %v385, %v1262
      %v1264 = vpop.f32.mrb[0].mxu0
      %v1265 = vpop.f32.mrb[0].mxu0
      %v1266 = vadd.f32 %v385, %v1265
      %v1267 = vpop.f32.mrb[0].mxu0
      %1268 = vmatprep.mubr.bf16.mxu0 %v992
      %1269 = vmatmul.mubr.bf16.gmra.mrb[0].mxu0 %v751
      %v1270 = vpop.f32.mrb[0].mxu0
      %v1271 = vadd.f32 %v385, %v1270
      %v1272 = vpop.f32.mrb[0].mxu0
      %v1273 = vpop.f32.mrb[0].mxu0
      %v1274 = vadd.f32 %v385, %v1273
      %v1275 = vpop.f32.mrb[0].mxu0
      %1276 = vmatprep.mubr.bf16.mxu0 %v995
      %1277 = vmatmul.mubr.bf16.gmra.mrb[0].mxu0 %v753
      %v1278 = vpop.f32.mrb[0].mxu0
      %v1279 = vadd.f32 %v385, %v1278
      %v1280 = vpop.f32.mrb[0].mxu0
      %v1281 = vpop.f32.mrb[0].mxu0
      %v1282 = vadd.f32 %v385, %v1281
      %v1283 = vpop.f32.mrb[0].mxu0
      %1284 = vmatprep.mubr.bf16.mxu0 %v998
      %1285 = vmatmul.mubr.bf16.gmra.mrb[0].mxu0 %v755
      %v1286 = vpop.f32.mrb[0].mxu0
      %v1287 = vadd.f32 %v385, %v1286
      %v1288 = vpop.f32.mrb[0].mxu0
      %v1289 = vpop.f32.mrb[0].mxu0
      %v1290 = vadd.f32 %v385, %v1289
      %v1291 = vpop.f32.mrb[0].mxu0
      %1292 = vmatprep.mubr.bf16.mxu0 %v1001
      %1293 = vmatmul.mubr.bf16.gmra.mrb[0].mxu0 %v757
      %v1294 = vpop.f32.mrb[0].mxu0
      %v1295 = vadd.f32 %v385, %v1294
      %v1296 = vpop.f32.mrb[0].mxu0
      %v1297 = vpop.f32.mrb[0].mxu0
      %v1298 = vadd.f32 %v385, %v1297
      %v1299 = vpop.f32.mrb[0].mxu0
      %1300 = vmatprep.mubr.bf16.mxu0 %v1004
      %1301 = vmatmul.mubr.bf16.gmra.mrb[0].mxu0 %v759
      %v1302 = vpop.f32.mrb[0].mxu0
      %v1303 = vadd.f32 %v385, %v1302
      %v1304 = vpop.f32.mrb[0].mxu0
      %v1305 = vpop.f32.mrb[0].mxu0
      %v1306 = vadd.f32 %v385, %v1305
      %v1307 = vpop.f32.mrb[0].mxu0
      %1308 = vmatprep.mubr.bf16.mxu0 %v1007
      %1309 = vmatmul.mubr.bf16.gmra.mrb[0].mxu0 %v761
      %v1310 = vpop.f32.mrb[0].mxu0
      %v1311 = vadd.f32 %v385, %v1310
      %v1312 = vpop.f32.mrb[0].mxu0
      %v1313 = vpop.f32.mrb[0].mxu0
      %v1314 = vadd.f32 %v385, %v1313
      %v1315 = vpop.f32.mrb[0].mxu0
      %1316 = vmatprep.mubr.bf16.mxu0 %v1010
      %1317 = vmatmul.mubr.bf16.gmra.mrb[0].mxu0 %v763
      %v1318 = vpop.f32.mrb[0].mxu0
      %v1319 = vadd.f32 %v385, %v1318
      %v1320 = vpop.f32.mrb[0].mxu0
      %v1321 = vpop.f32.mrb[0].mxu0
      %v1322 = vadd.f32 %v385, %v1321
      %v1323 = vpop.f32.mrb[0].mxu0
      %1324 = vmatprep.mubr.bf16.mxu0 %v1013
      %1325 = vmatmul.mubr.bf16.gmra.mrb[0].mxu0 %v765
      %v1326 = vpop.f32.mrb[0].mxu0
      %v1327 = vadd.f32 %v385, %v1326
      %v1328 = vpop.f32.mrb[0].mxu0
      %v1329 = vpop.f32.mrb[0].mxu0
      %v1330 = vadd.f32 %v385, %v1329
      %v1331 = vpop.f32.mrb[0].mxu0
      %1332 = vmatprep.mubr.bf16.mxu0 %v1016
      %1333 = vmatmul.mubr.bf16.gmra.mrb[0].mxu0 %v767
      %v1334 = vpop.f32.mrb[0].mxu0
      %v1335 = vadd.f32 %v385, %v1334
      %v1336 = vpop.f32.mrb[0].mxu0
      %v1337 = vpop.f32.mrb[0].mxu0
      %v1338 = vadd.f32 %v385, %v1337
      %v1339 = vpop.f32.mrb[0].mxu0
      %1340 = vmatprep.mubr.bf16.mxu0 %v1019
      %1341 = vmatmul.mubr.bf16.gmra.mrb[0].mxu0 %v769
      %v1342 = vpop.f32.mrb[0].mxu0
      %v1343 = vadd.f32 %v385, %v1342
      %v1344 = vpop.f32.mrb[0].mxu0
      %v1345 = vpop.f32.mrb[0].mxu0
      %v1346 = vadd.f32 %v385, %v1345
      %v1347 = vpop.f32.mrb[0].mxu0
      %1348 = vmatprep.mubr.bf16.mxu0 %v1022
      %1349 = vmatmul.mubr.bf16.gmra.mrb[0].mxu0 %v771
      %v1350 = vpop.f32.mrb[0].mxu0
      %v1351 = vadd.f32 %v385, %v1350
      %v1352 = vpop.f32.mrb[0].mxu0
      %v1353 = vpop.f32.mrb[0].mxu0
      %v1354 = vadd.f32 %v385, %v1353
      %v1355 = vpop.f32.mrb[0].mxu0
      %1356 = vmatprep.mubr.bf16.mxu0 %v1025
      %1357 = vmatmul.mubr.bf16.gmra.mrb[0].mxu0 %v773
      %v1358 = vpop.f32.mrb[0].mxu0
      %v1359 = vadd.f32 %v385, %v1358
      %v1360 = vpop.f32.mrb[0].mxu0
      %v1361 = vpop.f32.mrb[0].mxu0
      %v1362 = vadd.f32 %v385, %v1361
      %v1363 = vpop.f32.mrb[0].mxu0
      %1364 = vmatprep.mubr.bf16.mxu0 %v1028
      %1365 = vmatmul.mubr.bf16.gmra.mrb[0].mxu0 %v775
      %v1366 = vpop.f32.mrb[0].mxu0
      %v1367 = vadd.f32 %v385, %v1366
      %v1368 = vpop.f32.mrb[0].mxu0
      %v1369 = vpop.f32.mrb[0].mxu0
      %v1370 = vadd.f32 %v385, %v1369
      %v1371 = vpop.f32.mrb[0].mxu0
      %1372 = vmatprep.mubr.bf16.mxu0 %v1031
      %1373 = vmatmul.mubr.bf16.gmra.mrb[0].mxu0 %v777
      %v1374 = vpop.f32.mrb[0].mxu0
      %v1375 = vadd.f32 %v385, %v1374
      %v1376 = vpop.f32.mrb[0].mxu0
      %v1377 = vpop.f32.mrb[0].mxu0
      %v1378 = vadd.f32 %v385, %v1377
      %v1379 = vpop.f32.mrb[0].mxu0
      %1380 = vmatprep.mubr.bf16.mxu0 %v1034
      %1381 = vmatmul.mubr.bf16.gmra.mrb[0].mxu0 %v779
      %v1382 = vpop.f32.mrb[0].mxu0
      %v1383 = vadd.f32 %v385, %v1382
      %v1384 = vpop.f32.mrb[0].mxu0
      %v1385 = vpop.f32.mrb[0].mxu0
      %v1386 = vadd.f32 %v385, %v1385
      %v1387 = vpop.f32.mrb[0].mxu0
      %1388 = vmatprep.mubr.bf16.mxu0 %v1037
      %1389 = vmatmul.mubr.bf16.gmra.mrb[0].mxu0 %v781
      %v1390 = vpop.f32.mrb[0].mxu0
      %v1391 = vadd.f32 %v385, %v1390
      %v1392 = vpop.f32.mrb[0].mxu0
      %v1393 = vpop.f32.mrb[0].mxu0
      %v1394 = vadd.f32 %v385, %v1393
      %v1395 = vpop.f32.mrb[0].mxu0
      %1396 = vmatprep.mubr.bf16.mxu0 %v1040
      %1397 = vmatmul.mubr.bf16.gmra.mrb[0].mxu0 %v783
      %v1398 = vpop.f32.mrb[0].mxu0
      %v1399 = vadd.f32 %v385, %v1398
      %v1400 = vpop.f32.mrb[0].mxu0
      %v1401 = vpop.f32.mrb[0].mxu0
      %v1402 = vadd.f32 %v385, %v1401
      %v1403 = vpop.f32.mrb[0].mxu0
      %1404 = vmatprep.mubr.bf16.mxu0 %v1043
      %1405 = vmatmul.mubr.bf16.gmra.mrb[0].mxu0 %v785
      %v1406 = vpop.f32.mrb[0].mxu0
      %v1407 = vadd.f32 %v385, %v1406
      %v1408 = vpop.f32.mrb[0].mxu0
      %v1409 = vpop.f32.mrb[0].mxu0
      %v1410 = vadd.f32 %v385, %v1409
      %v1411 = vpop.f32.mrb[0].mxu0
      %1412 = vmatprep.mubr.bf16.mxu0 %v1046
      %1413 = vmatmul.mubr.bf16.gmra.mrb[0].mxu0 %v787
      %v1414 = vpop.f32.mrb[0].mxu0
      %v1415 = vadd.f32 %v385, %v1414
      %v1416 = vpop.f32.mrb[0].mxu0
      %v1417 = vpop.f32.mrb[0].mxu0
      %v1418 = vadd.f32 %v385, %v1417
      %v1419 = vpop.f32.mrb[0].mxu0
      %1420 = vmatprep.mubr.bf16.mxu0 %v1049
      %1421 = vmatmul.mubr.bf16.gmra.mrb[0].mxu0 %v789
      %v1422 = vpop.f32.mrb[0].mxu0
      %v1423 = vadd.f32 %v385, %v1422
      %v1424 = vpop.f32.mrb[0].mxu0
      %v1425 = vpop.f32.mrb[0].mxu0
      %v1426 = vadd.f32 %v385, %v1425
      %v1427 = vpop.f32.mrb[0].mxu0
      %1428 = vmatprep.mubr.bf16.mxu0 %v1052
      %1429 = vmatmul.mubr.bf16.gmra.mrb[0].mxu0 %v791
      %v1430 = vpop.f32.mrb[0].mxu0
      %v1431 = vadd.f32 %v385, %v1430
      %v1432 = vpop.f32.mrb[0].mxu0
      %v1433 = vpop.f32.mrb[0].mxu0
      %v1434 = vadd.f32 %v385, %v1433
      %v1435 = vpop.f32.mrb[0].mxu0
      %1436 = vmatprep.mubr.bf16.mxu0 %v1055
      %1437 = vmatmul.mubr.bf16.gmra.mrb[0].mxu0 %v793
      %v1438 = vpop.f32.mrb[0].mxu0
      %v1439 = vadd.f32 %v385, %v1438
      %v1440 = vpop.f32.mrb[0].mxu0
      %v1441 = vpop.f32.mrb[0].mxu0
      %v1442 = vadd.f32 %v385, %v1441
      %v1443 = vpop.f32.mrb[0].mxu0
      %1444 = vmatprep.mubr.bf16.mxu0 %v1058
      %1445 = vmatmul.mubr.bf16.gmra.mrb[0].mxu0 %v795
      %v1446 = vpop.f32.mrb[0].mxu0
      %v1447 = vadd.f32 %v385, %v1446
      %v1448 = vpop.f32.mrb[0].mxu0
      %v1449 = vpop.f32.mrb[0].mxu0
      %v1450 = vadd.f32 %v385, %v1449
      %v1451 = vpop.f32.mrb[0].mxu0
      %1452 = vmatprep.mubr.bf16.mxu0 %v1061
      %1453 = vmatmul.mubr.bf16.gmra.mrb[0].mxu0 %v797
      %v1454 = vpop.f32.mrb[0].mxu0
      %v1455 = vadd.f32 %v385, %v1454
      %v1456 = vpop.f32.mrb[0].mxu0
      %v1457 = vpop.f32.mrb[0].mxu0
      %v1458 = vadd.f32 %v385, %v1457
      %v1459 = vpop.f32.mrb[0].mxu0
      %1460 = vmatprep.mubr.bf16.mxu0 %v1064
      %1461 = vmatmul.mubr.bf16.gmra.mrb[0].mxu0 %v799
      %v1462 = vpop.f32.mrb[0].mxu0
      %v1463 = vadd.f32 %v385, %v1462
      %v1464 = vpop.f32.mrb[0].mxu0
      %v1465 = vpop.f32.mrb[0].mxu0
      %v1466 = vadd.f32 %v385, %v1465
      %v1467 = vpop.f32.mrb[0].mxu0
      %1468 = vmatprep.mubr.bf16.mxu0 %v1067
      %1469 = vmatmul.mubr.bf16.gmra.mrb[0].mxu0 %v801
      %v1470 = vpop.f32.mrb[0].mxu0
      %v1471 = vadd.f32 %v385, %v1470
      %v1472 = vpop.f32.mrb[0].mxu0
      %v1473 = vpop.f32.mrb[0].mxu0
      %v1474 = vadd.f32 %v385, %v1473
      %v1475 = vpop.f32.mrb[0].mxu0
      %1476 = vmatprep.mubr.bf16.mxu0 %v1070
      %1477 = vmatmul.mubr.bf16.gmra.mrb[0].mxu0 %v803
      %v1478 = vpop.f32.mrb[0].mxu0
      %v1479 = vadd.f32 %v385, %v1478
      %v1480 = vpop.f32.mrb[0].mxu0
      %v1481 = vpop.f32.mrb[0].mxu0
      %v1482 = vadd.f32 %v385, %v1481
      %v1483 = vpop.f32.mrb[0].mxu0
      %1484 = vmatprep.mubr.bf16.mxu0 %v1073
      %1485 = vmatmul.mubr.bf16.gmra.mrb[0].mxu0 %v805
      %v1486 = vpop.f32.mrb[0].mxu0
      %v1487 = vadd.f32 %v385, %v1486
      %v1488 = vpop.f32.mrb[0].mxu0
      %v1489 = vpop.f32.mrb[0].mxu0
      %v1490 = vadd.f32 %v385, %v1489
      %v1491 = vpop.f32.mrb[0].mxu0
      %1492 = vmatprep.mubr.bf16.mxu0 %v1076
      %1493 = vmatmul.mubr.bf16.gmra.mrb[0].mxu0 %v807
      %v1494 = vpop.f32.mrb[0].mxu0
      %v1495 = vadd.f32 %v385, %v1494
      %v1496 = vpop.f32.mrb[0].mxu0
      %v1497 = vpop.f32.mrb[0].mxu0
      %v1498 = vadd.f32 %v385, %v1497
      %v1499 = vpop.f32.mrb[0].mxu0
      %1500 = vmatprep.mubr.bf16.mxu0 %v1079
      %1501 = vmatmul.mubr.bf16.gmra.mrb[0].mxu0 %v809
      %v1502 = vpop.f32.mrb[0].mxu0
      %v1503 = vadd.f32 %v385, %v1502
      %v1504 = vpop.f32.mrb[0].mxu0
      %v1505 = vpop.f32.mrb[0].mxu0
      %v1506 = vadd.f32 %v385, %v1505
      %v1507 = vpop.f32.mrb[0].mxu0
      %1508 = vmatprep.mubr.bf16.mxu0 %v1082
      %1509 = vmatmul.mubr.bf16.gmra.mrb[0].mxu0 %v811
      %v1510 = vpop.f32.mrb[0].mxu0
      %v1511 = vadd.f32 %v385, %v1510
      %v1512 = vpop.f32.mrb[0].mxu0
      %v1513 = vpop.f32.mrb[0].mxu0
      %v1514 = vadd.f32 %v385, %v1513
      %v1515 = vpop.f32.mrb[0].mxu0
      %1516 = vmatprep.mubr.bf16.mxu0 %v1085
      %1517 = vmatmul.mubr.bf16.gmra.mrb[0].mxu0 %v813
      %v1518 = vpop.f32.mrb[0].mxu0
      %v1519 = vadd.f32 %v385, %v1518
      %v1520 = vpop.f32.mrb[0].mxu0
      %v1521 = vpop.f32.mrb[0].mxu0
      %v1522 = vadd.f32 %v385, %v1521
      %v1523 = vpop.f32.mrb[0].mxu0
      %1524 = vmatprep.mubr.bf16.mxu0 %v1088
      %1525 = vmatmul.mubr.bf16.gmra.mrb[0].mxu0 %v815
      %v1526 = vpop.f32.mrb[0].mxu0
      %v1527 = vadd.f32 %v385, %v1526
      %v1528 = vpop.f32.mrb[0].mxu0
      %v1529 = vpop.f32.mrb[0].mxu0
      %v1530 = vadd.f32 %v385, %v1529
      %v1531 = vpop.f32.mrb[0].mxu0
      %1532 = vmatprep.mubr.bf16.mxu0 %v1091
      %1533 = vmatmul.mubr.bf16.gmra.mrb[0].mxu0 %v817
      %v1534 = vpop.f32.mrb[0].mxu0
      %v1535 = vadd.f32 %v385, %v1534
      %v1536 = vpop.f32.mrb[0].mxu0
      %v1537 = vpop.f32.mrb[0].mxu0
      %v1538 = vadd.f32 %v385, %v1537
      %v1539 = vpop.f32.mrb[0].mxu0
      %1540 = vmatprep.mubr.bf16.mxu0 %v1094
      %1541 = vmatmul.mubr.bf16.gmra.mrb[0].mxu0 %v819
      %v1542 = vpop.f32.mrb[0].mxu0
      %v1543 = vadd.f32 %v385, %v1542
      %v1544 = vpop.f32.mrb[0].mxu0
      %v1545 = vpop.f32.mrb[0].mxu0
      %v1546 = vadd.f32 %v385, %v1545
      %v1547 = vpop.f32.mrb[0].mxu0
      %1548 = vmatprep.mubr.bf16.mxu0 %v1097
      %1549 = vmatmul.mubr.bf16.gmra.mrb[0].mxu0 %v821
      %v1550 = vpop.f32.mrb[0].mxu0
      %v1551 = vadd.f32 %v385, %v1550
      %v1552 = vpop.f32.mrb[0].mxu0
      %v1553 = vpop.f32.mrb[0].mxu0
      %v1554 = vadd.f32 %v385, %v1553
      %v1555 = vpop.f32.mrb[0].mxu0
      %1556 = vmatprep.mubr.bf16.mxu0 %v1100
      %1557 = vmatmul.mubr.bf16.gmra.mrb[0].mxu0 %v823
      %v1558 = vpop.f32.mrb[0].mxu0
      %v1559 = vadd.f32 %v385, %v1558
      %v1560 = vpop.f32.mrb[0].mxu0
      %v1561 = vpop.f32.mrb[0].mxu0
      %v1562 = vadd.f32 %v385, %v1561
      %v1563 = vpop.f32.mrb[0].mxu0
      %1564 = vmatprep.mubr.bf16.mxu0 %v1103
      %1565 = vmatmul.mubr.bf16.gmra.mrb[0].mxu0 %v825
      %v1566 = vpop.f32.mrb[0].mxu0
      %v1567 = vadd.f32 %v385, %v1566
      %v1568 = vpop.f32.mrb[0].mxu0
      %v1569 = vpop.f32.mrb[0].mxu0
      %v1570 = vadd.f32 %v385, %v1569
      %v1571 = vpop.f32.mrb[0].mxu0
      %1572 = vmatprep.mubr.bf16.mxu0 %v1106
      %1573 = vmatmul.mubr.bf16.gmra.mrb[0].mxu0 %v827
      %v1574 = vpop.f32.mrb[0].mxu0
      %v1575 = vadd.f32 %v385, %v1574
      %v1576 = vpop.f32.mrb[0].mxu0
      %v1577 = vpop.f32.mrb[0].mxu0
      %v1578 = vadd.f32 %v385, %v1577
      %v1579 = vpop.f32.mrb[0].mxu0
      %1580 = vmatprep.mubr.bf16.mxu0 %v1109
      %1581 = vmatmul.mubr.bf16.gmra.mrb[0].mxu0 %v829
      %v1582 = vpop.f32.mrb[0].mxu0
      %v1583 = vadd.f32 %v385, %v1582
      %v1584 = vpop.f32.mrb[0].mxu0
      %v1585 = vpop.f32.mrb[0].mxu0
      %v1586 = vadd.f32 %v385, %v1585
      %v1587 = vpop.f32.mrb[0].mxu0
      %1588 = vmatprep.mubr.bf16.mxu0 %v1112
      %1589 = vmatmul.mubr.bf16.gmra.mrb[0].mxu0 %v831
      %v1590 = vpop.f32.mrb[0].mxu0
      %v1591 = vadd.f32 %v385, %v1590
      %v1592 = vpop.f32.mrb[0].mxu0
      %v1593 = vpop.f32.mrb[0].mxu0
      %v1594 = vadd.f32 %v385, %v1593
      %v1595 = vpop.f32.mrb[0].mxu0
      %1596 = vmatprep.mubr.bf16.mxu0 %v1115
      %1597 = vmatmul.mubr.bf16.gmra.mrb[0].mxu0 %v833
      %v1598 = vpop.f32.mrb[0].mxu0
      %v1599 = vadd.f32 %v385, %v1598
      %v1600 = vpop.f32.mrb[0].mxu0
      %v1601 = vpop.f32.mrb[0].mxu0
      %v1602 = vadd.f32 %v385, %v1601
      %v1603 = vpop.f32.mrb[0].mxu0
      %1604 = vdwg.mxu0
      %v1605 = vpack.c.bf16 %v1162, %v1159
      %v1606 = vpack.c.bf16 %v1170, %v1167
      %v1607 = vpack.c.bf16 %v1178, %v1175
      %v1608 = vpack.c.bf16 %v1186, %v1183
      %v1609 = vpack.c.bf16 %v1194, %v1191
      %v1610 = vpack.c.bf16 %v1202, %v1199
      %v1611 = vpack.c.bf16 %v1210, %v1207
      %v1612 = vpack.c.bf16 %v1218, %v1215
      %v1613 = vpack.c.bf16 %v1226, %v1223
      %v1614 = vpack.c.bf16 %v1234, %v1231
      %v1615 = vpack.c.bf16 %v1242, %v1239
      %v1616 = vpack.c.bf16 %v1250, %v1247
      %v1617 = vpack.c.bf16 %v1258, %v1255
      %v1618 = vpack.c.bf16 %v1266, %v1263
      %v1619 = vpack.c.bf16 %v1274, %v1271
      %v1620 = vpack.c.bf16 %v1282, %v1279
      %v1621 = vpack.c.bf16 %v1290, %v1287
      %v1622 = vpack.c.bf16 %v1298, %v1295
      %v1623 = vpack.c.bf16 %v1306, %v1303
      %v1624 = vpack.c.bf16 %v1314, %v1311
      %v1625 = vpack.c.bf16 %v1322, %v1319
      %v1626 = vpack.c.bf16 %v1330, %v1327
      %v1627 = vpack.c.bf16 %v1338, %v1335
      %v1628 = vpack.c.bf16 %v1346, %v1343
      %v1629 = vpack.c.bf16 %v1354, %v1351
      %v1630 = vpack.c.bf16 %v1362, %v1359
      %v1631 = vpack.c.bf16 %v1370, %v1367
      %v1632 = vpack.c.bf16 %v1378, %v1375
      %v1633 = vpack.c.bf16 %v1386, %v1383
      %v1634 = vpack.c.bf16 %v1394, %v1391
      %v1635 = vpack.c.bf16 %v1402, %v1399
      %v1636 = vpack.c.bf16 %v1410, %v1407
      %v1637 = vpack.c.bf16 %v1418, %v1415
      %v1638 = vpack.c.bf16 %v1426, %v1423
      %v1639 = vpack.c.bf16 %v1434, %v1431
      %v1640 = vpack.c.bf16 %v1442, %v1439
      %v1641 = vpack.c.bf16 %v1450, %v1447
      %v1642 = vpack.c.bf16 %v1458, %v1455
      %v1643 = vpack.c.bf16 %v1466, %v1463
      %v1644 = vpack.c.bf16 %v1474, %v1471
      %v1645 = vpack.c.bf16 %v1482, %v1479
      %v1646 = vpack.c.bf16 %v1490, %v1487
      %v1647 = vpack.c.bf16 %v1498, %v1495
      %v1648 = vpack.c.bf16 %v1506, %v1503
      %v1649 = vpack.c.bf16 %v1514, %v1511
      %v1650 = vpack.c.bf16 %v1522, %v1519
      %v1651 = vpack.c.bf16 %v1530, %v1527
      %v1652 = vpack.c.bf16 %v1538, %v1535
      %v1653 = vpack.c.bf16 %v1546, %v1543
      %v1654 = vpack.c.bf16 %v1554, %v1551
      %v1655 = vpack.c.bf16 %v1562, %v1559
      %v1656 = vpack.c.bf16 %v1570, %v1567
      %v1657 = vpack.c.bf16 %v1578, %v1575
      %v1658 = vpack.c.bf16 %v1586, %v1583
      %v1659 = vpack.c.bf16 %v1594, %v1591
      %v1660 = vpack.c.bf16 %v1602, %v1599
      %v1717 = vunpack.c.l.b16 %v1605
      %v1718 = vunpack.c.h.b16 %v1605
      %v1719 = vunpack.c.l.b16 %v1606
      %v1720 = vunpack.c.h.b16 %v1606
      %v1721 = vunpack.c.l.b16 %v1607
      %v1722 = vunpack.c.h.b16 %v1607
      %v1723 = vunpack.c.l.b16 %v1608
      %v1724 = vunpack.c.h.b16 %v1608
      %v1725 = vunpack.c.l.b16 %v1609
      %v1726 = vunpack.c.h.b16 %v1609
      %v1727 = vunpack.c.l.b16 %v1610
      %v1728 = vunpack.c.h.b16 %v1610
      %v1729 = vunpack.c.l.b16 %v1611
      %v1730 = vunpack.c.h.b16 %v1611
      %v1731 = vunpack.c.l.b16 %v1612
      %v1732 = vunpack.c.h.b16 %v1612
      %v1733 = vunpack.c.l.b16 %v1613
      %v1734 = vunpack.c.h.b16 %v1613
      %v1735 = vunpack.c.l.b16 %v1614
      %v1736 = vunpack.c.h.b16 %v1614
      %v1737 = vunpack.c.l.b16 %v1615
      %v1738 = vunpack.c.h.b16 %v1615
      %v1739 = vunpack.c.l.b16 %v1616
      %v1740 = vunpack.c.h.b16 %v1616
      %v1741 = vunpack.c.l.b16 %v1617
      %v1742 = vunpack.c.h.b16 %v1617
      %v1743 = vunpack.c.l.b16 %v1618
      %v1744 = vunpack.c.h.b16 %v1618
      %v1745 = vunpack.c.l.b16 %v1619
      %v1746 = vunpack.c.h.b16 %v1619
      %v1747 = vunpack.c.l.b16 %v1620
      %v1748 = vunpack.c.h.b16 %v1620
      %v1749 = vunpack.c.l.b16 %v1621
      %v1750 = vunpack.c.h.b16 %v1621
      %v1751 = vunpack.c.l.b16 %v1622
      %v1752 = vunpack.c.h.b16 %v1622
      %v1753 = vunpack.c.l.b16 %v1623
      %v1754 = vunpack.c.h.b16 %v1623
      %v1755 = vunpack.c.l.b16 %v1624
      %v1756 = vunpack.c.h.b16 %v1624
      %v1757 = vunpack.c.l.b16 %v1625
      %v1758 = vunpack.c.h.b16 %v1625
      %v1759 = vunpack.c.l.b16 %v1626
      %v1760 = vunpack.c.h.b16 %v1626
      %v1761 = vunpack.c.l.b16 %v1627
      %v1762 = vunpack.c.h.b16 %v1627
      %v1763 = vunpack.c.l.b16 %v1628
      %v1764 = vunpack.c.h.b16 %v1628
      %v1765 = vunpack.c.l.b16 %v1629
      %v1766 = vunpack.c.h.b16 %v1629
      %v1767 = vunpack.c.l.b16 %v1630
      %v1768 = vunpack.c.h.b16 %v1630
      %v1769 = vunpack.c.l.b16 %v1631
      %v1770 = vunpack.c.h.b16 %v1631
      %v1771 = vunpack.c.l.b16 %v1632
      %v1772 = vunpack.c.h.b16 %v1632
      %v1773 = vunpack.c.l.b16 %v1633
      %v1774 = vunpack.c.h.b16 %v1633
      %v1775 = vunpack.c.l.b16 %v1634
      %v1776 = vunpack.c.h.b16 %v1634
      %v1777 = vunpack.c.l.b16 %v1635
      %v1778 = vunpack.c.h.b16 %v1635
      %v1779 = vunpack.c.l.b16 %v1636
      %v1780 = vunpack.c.h.b16 %v1636
      %v1781 = vunpack.c.l.b16 %v1637
      %v1782 = vunpack.c.h.b16 %v1637
      %v1783 = vunpack.c.l.b16 %v1638
      %v1784 = vunpack.c.h.b16 %v1638
      %v1785 = vunpack.c.l.b16 %v1639
      %v1786 = vunpack.c.h.b16 %v1639
      %v1787 = vunpack.c.l.b16 %v1640
      %v1788 = vunpack.c.h.b16 %v1640
      %v1789 = vunpack.c.l.b16 %v1641
      %v1790 = vunpack.c.h.b16 %v1641
      %v1791 = vunpack.c.l.b16 %v1642
      %v1792 = vunpack.c.h.b16 %v1642
      %v1793 = vunpack.c.l.b16 %v1643
      %v1794 = vunpack.c.h.b16 %v1643
      %v1795 = vunpack.c.l.b16 %v1644
      %v1796 = vunpack.c.h.b16 %v1644
      %v1797 = vunpack.c.l.b16 %v1645
      %v1798 = vunpack.c.h.b16 %v1645
      %v1799 = vunpack.c.l.b16 %v1646
      %v1800 = vunpack.c.h.b16 %v1646
      %v1801 = vunpack.c.l.b16 %v1647
      %v1802 = vunpack.c.h.b16 %v1647
      %v1803 = vunpack.c.l.b16 %v1648
      %v1804 = vunpack.c.h.b16 %v1648
      %v1805 = vunpack.c.l.b16 %v1649
      %v1806 = vunpack.c.h.b16 %v1649
      %v1807 = vunpack.c.l.b16 %v1650
      %v1808 = vunpack.c.h.b16 %v1650
      %v1809 = vunpack.c.l.b16 %v1651
      %v1810 = vunpack.c.h.b16 %v1651
      %v1811 = vunpack.c.l.b16 %v1652
      %v1812 = vunpack.c.h.b16 %v1652
      %v1813 = vunpack.c.l.b16 %v1653
      %v1814 = vunpack.c.h.b16 %v1653
      %v1815 = vunpack.c.l.b16 %v1654
      %v1816 = vunpack.c.h.b16 %v1654
      %v1817 = vunpack.c.l.b16 %v1655
      %v1818 = vunpack.c.h.b16 %v1655
      %v1819 = vunpack.c.l.b16 %v1656
      %v1820 = vunpack.c.h.b16 %v1656
      %v1821 = vunpack.c.l.b16 %v1657
      %v1822 = vunpack.c.h.b16 %v1657
      %v1823 = vunpack.c.l.b16 %v1658
      %v1824 = vunpack.c.h.b16 %v1658
      %v1825 = vunpack.c.l.b16 %v1659
      %v1826 = vunpack.c.h.b16 %v1659
      %v1827 = vunpack.c.l.b16 %v1660
      %v1828 = vunpack.c.h.b16 %v1660
      %v1829 = vpack.c.b16 %v1717, %v1717
      %v1830 = vpack.c.b16 %v1718, %v1718
      %v1831 = vpack.c.b16 %v1719, %v1719
      %v1832 = vpack.c.b16 %v1720, %v1720
      %v1833 = vpack.c.b16 %v1721, %v1721
      %v1834 = vpack.c.b16 %v1722, %v1722
      %v1835 = vpack.c.b16 %v1723, %v1723
      %v1836 = vpack.c.b16 %v1724, %v1724
      %v1837 = vpack.c.b16 %v1725, %v1725
      %v1838 = vpack.c.b16 %v1726, %v1726
      %v1839 = vpack.c.b16 %v1727, %v1727
      %v1840 = vpack.c.b16 %v1728, %v1728
      %v1841 = vpack.c.b16 %v1729, %v1729
      %v1842 = vpack.c.b16 %v1730, %v1730
      %v1843 = vpack.c.b16 %v1731, %v1731
      %v1844 = vpack.c.b16 %v1732, %v1732
      %v1845 = vpack.c.b16 %v1733, %v1733
      %v1846 = vpack.c.b16 %v1734, %v1734
      %v1847 = vpack.c.b16 %v1735, %v1735
      %v1848 = vpack.c.b16 %v1736, %v1736
      %v1849 = vpack.c.b16 %v1737, %v1737
      %v1850 = vpack.c.b16 %v1738, %v1738
      %v1851 = vpack.c.b16 %v1739, %v1739
      %v1852 = vpack.c.b16 %v1740, %v1740
      %v1853 = vpack.c.b16 %v1741, %v1741
      %v1854 = vpack.c.b16 %v1742, %v1742
      %v1855 = vpack.c.b16 %v1743, %v1743
      %v1856 = vpack.c.b16 %v1744, %v1744
      %v1857 = vpack.c.b16 %v1745, %v1745
      %v1858 = vpack.c.b16 %v1746, %v1746
      %v1859 = vpack.c.b16 %v1747, %v1747
      %v1860 = vpack.c.b16 %v1748, %v1748
      %v1861 = vpack.c.b16 %v1749, %v1749
      %v1862 = vpack.c.b16 %v1750, %v1750
      %v1863 = vpack.c.b16 %v1751, %v1751
      %v1864 = vpack.c.b16 %v1752, %v1752
      %v1865 = vpack.c.b16 %v1753, %v1753
      %v1866 = vpack.c.b16 %v1754, %v1754
      %v1867 = vpack.c.b16 %v1755, %v1755
      %v1868 = vpack.c.b16 %v1756, %v1756
      %v1869 = vpack.c.b16 %v1757, %v1757
      %v1870 = vpack.c.b16 %v1758, %v1758
      %v1871 = vpack.c.b16 %v1759, %v1759
      %v1872 = vpack.c.b16 %v1760, %v1760
      %v1873 = vpack.c.b16 %v1761, %v1761
      %v1874 = vpack.c.b16 %v1762, %v1762
      %v1875 = vpack.c.b16 %v1763, %v1763
      %v1876 = vpack.c.b16 %v1764, %v1764
      %v1877 = vpack.c.b16 %v1765, %v1765
      %v1878 = vpack.c.b16 %v1766, %v1766
      %v1879 = vpack.c.b16 %v1767, %v1767
      %v1880 = vpack.c.b16 %v1768, %v1768
      %v1881 = vpack.c.b16 %v1769, %v1769
      %v1882 = vpack.c.b16 %v1770, %v1770
      %v1883 = vpack.c.b16 %v1771, %v1771
      %v1884 = vpack.c.b16 %v1772, %v1772
      %v1885 = vpack.c.b16 %v1773, %v1773
      %v1886 = vpack.c.b16 %v1774, %v1774
      %v1887 = vpack.c.b16 %v1775, %v1775
      %v1888 = vpack.c.b16 %v1776, %v1776
      %v1889 = vpack.c.b16 %v1777, %v1777
      %v1890 = vpack.c.b16 %v1778, %v1778
      %v1891 = vpack.c.b16 %v1779, %v1779
      %v1892 = vpack.c.b16 %v1780, %v1780
      %v1893 = vpack.c.b16 %v1781, %v1781
      %v1894 = vpack.c.b16 %v1782, %v1782
      %v1895 = vpack.c.b16 %v1783, %v1783
      %v1896 = vpack.c.b16 %v1784, %v1784
      %v1897 = vpack.c.b16 %v1785, %v1785
      %v1898 = vpack.c.b16 %v1786, %v1786
      %v1899 = vpack.c.b16 %v1787, %v1787
      %v1900 = vpack.c.b16 %v1788, %v1788
      %v1901 = vpack.c.b16 %v1789, %v1789
      %v1902 = vpack.c.b16 %v1790, %v1790
      %v1903 = vpack.c.b16 %v1791, %v1791
      %v1904 = vpack.c.b16 %v1792, %v1792
      %v1905 = vpack.c.b16 %v1793, %v1793
      %v1906 = vpack.c.b16 %v1794, %v1794
      %v1907 = vpack.c.b16 %v1795, %v1795
      %v1908 = vpack.c.b16 %v1796, %v1796
      %v1909 = vpack.c.b16 %v1797, %v1797
      %v1910 = vpack.c.b16 %v1798, %v1798
      %v1911 = vpack.c.b16 %v1799, %v1799
      %v1912 = vpack.c.b16 %v1800, %v1800
      %v1913 = vpack.c.b16 %v1801, %v1801
      %v1914 = vpack.c.b16 %v1802, %v1802
      %v1915 = vpack.c.b16 %v1803, %v1803
      %v1916 = vpack.c.b16 %v1804, %v1804
      %v1917 = vpack.c.b16 %v1805, %v1805
      %v1918 = vpack.c.b16 %v1806, %v1806
      %v1919 = vpack.c.b16 %v1807, %v1807
      %v1920 = vpack.c.b16 %v1808, %v1808
      %v1921 = vpack.c.b16 %v1809, %v1809
      %v1922 = vpack.c.b16 %v1810, %v1810
      %v1923 = vpack.c.b16 %v1811, %v1811
      %v1924 = vpack.c.b16 %v1812, %v1812
      %v1925 = vpack.c.b16 %v1813, %v1813
      %v1926 = vpack.c.b16 %v1814, %v1814
      %v1927 = vpack.c.b16 %v1815, %v1815
      %v1928 = vpack.c.b16 %v1816, %v1816
      %v1929 = vpack.c.b16 %v1817, %v1817
      %v1930 = vpack.c.b16 %v1818, %v1818
      %v1931 = vpack.c.b16 %v1819, %v1819
      %v1932 = vpack.c.b16 %v1820, %v1820
      %v1933 = vpack.c.b16 %v1821, %v1821
      %v1934 = vpack.c.b16 %v1822, %v1822
      %v1935 = vpack.c.b16 %v1823, %v1823
      %v1936 = vpack.c.b16 %v1824, %v1824
      %v1937 = vpack.c.b16 %v1825, %v1825
      %v1938 = vpack.c.b16 %v1826, %v1826
      %v1939 = vpack.c.b16 %v1827, %v1827
      %v1940 = vpack.c.b16 %v1828, %v1828
      %vm2053 = vcmask 519168
      %2054 = vst.msk [vmem:[%s240] sm:$0xf] %vm2053, %v1829
      %2055 = vst.msk [vmem:[%s240 + $0x4] sm:$0xf] %vm2053, %v1830
      %2056 = vst.msk [vmem:[%s240 + $0x8] sm:$0xf] %vm2053, %v1831
      %2057 = vst.msk [vmem:[%s240 + $0xc] sm:$0xf] %vm2053, %v1832
      %2058 = vst.msk [vmem:[%s240 + $0x10] sm:$0xf] %vm2053, %v1833
      %2059 = vst.msk [vmem:[%s240 + $0x14] sm:$0xf] %vm2053, %v1834
      %2060 = vst.msk [vmem:[%s240 + $0x18] sm:$0xf] %vm2053, %v1835
      %2061 = vst.msk [vmem:[%s240 + $0x1c] sm:$0xf] %vm2053, %v1836
      %2062 = vst.msk [vmem:[%s240 + $0x20] sm:$0xf] %vm2053, %v1837
      %2063 = vst.msk [vmem:[%s240 + $0x24] sm:$0xf] %vm2053, %v1838
      %2064 = vst.msk [vmem:[%s240 + $0x28] sm:$0xf] %vm2053, %v1839
      %2065 = vst.msk [vmem:[%s240 + $0x2c] sm:$0xf] %vm2053, %v1840
      %2066 = vst.msk [vmem:[%s240 + $0x30] sm:$0xf] %vm2053, %v1841
      %2067 = vst.msk [vmem:[%s240 + $0x34] sm:$0xf] %vm2053, %v1842
      %2068 = vst.msk [vmem:[%s240 + $0x38] sm:$0xf] %vm2053, %v1843
      %2069 = vst.msk [vmem:[%s240 + $0x3c] sm:$0xf] %vm2053, %v1844
      %2070 = vst.msk [vmem:[%s240 + $0x40] sm:$0xf] %vm2053, %v1845
      %2071 = vst.msk [vmem:[%s240 + $0x44] sm:$0xf] %vm2053, %v1846
      %2072 = vst.msk [vmem:[%s240 + $0x48] sm:$0xf] %vm2053, %v1847
      %2073 = vst.msk [vmem:[%s240 + $0x4c] sm:$0xf] %vm2053, %v1848
      %2074 = vst.msk [vmem:[%s240 + $0x50] sm:$0xf] %vm2053, %v1849
      %2075 = vst.msk [vmem:[%s240 + $0x54] sm:$0xf] %vm2053, %v1850
      %2076 = vst.msk [vmem:[%s240 + $0x58] sm:$0xf] %vm2053, %v1851
      %2077 = vst.msk [vmem:[%s240 + $0x5c] sm:$0xf] %vm2053, %v1852
      %2078 = vst.msk [vmem:[%s240 + $0x60] sm:$0xf] %vm2053, %v1853
      %2079 = vst.msk [vmem:[%s240 + $0x64] sm:$0xf] %vm2053, %v1854
      %2080 = vst.msk [vmem:[%s240 + $0x68] sm:$0xf] %vm2053, %v1855
      %2081 = vst.msk [vmem:[%s240 + $0x6c] sm:$0xf] %vm2053, %v1856
      %2082 = vst.msk [vmem:[%s240 + $0x70] sm:$0xf] %vm2053, %v1857
      %2083 = vst.msk [vmem:[%s240 + $0x74] sm:$0xf] %vm2053, %v1858
      %2084 = vst.msk [vmem:[%s240 + $0x78] sm:$0xf] %vm2053, %v1859
      %2085 = vst.msk [vmem:[%s240 + $0x7c] sm:$0xf] %vm2053, %v1860
      %2086 = vst.msk [vmem:[%s240 + $0x80] sm:$0xf] %vm2053, %v1861
      %2087 = vst.msk [vmem:[%s240 + $0x84] sm:$0xf] %vm2053, %v1862
      %2088 = vst.msk [vmem:[%s240 + $0x88] sm:$0xf] %vm2053, %v1863
      %2089 = vst.msk [vmem:[%s240 + $0x8c] sm:$0xf] %vm2053, %v1864
      %2090 = vst.msk [vmem:[%s240 + $0x90] sm:$0xf] %vm2053, %v1865
      %2091 = vst.msk [vmem:[%s240 + $0x94] sm:$0xf] %vm2053, %v1866
      %2092 = vst.msk [vmem:[%s240 + $0x98] sm:$0xf] %vm2053, %v1867
      %2093 = vst.msk [vmem:[%s240 + $0x9c] sm:$0xf] %vm2053, %v1868
      %2094 = vst.msk [vmem:[%s240 + $0xa0] sm:$0xf] %vm2053, %v1869
      %2095 = vst.msk [vmem:[%s240 + $0xa4] sm:$0xf] %vm2053, %v1870
      %2096 = vst.msk [vmem:[%s240 + $0xa8] sm:$0xf] %vm2053, %v1871
      %2097 = vst.msk [vmem:[%s240 + $0xac] sm:$0xf] %vm2053, %v1872
      %2098 = vst.msk [vmem:[%s240 + $0xb0] sm:$0xf] %vm2053, %v1873
      %2099 = vst.msk [vmem:[%s240 + $0xb4] sm:$0xf] %vm2053, %v1874
      %2100 = vst.msk [vmem:[%s240 + $0xb8] sm:$0xf] %vm2053, %v1875
      %2101 = vst.msk [vmem:[%s240 + $0xbc] sm:$0xf] %vm2053, %v1876
      %2102 = vst.msk [vmem:[%s240 + $0xc0] sm:$0xf] %vm2053, %v1877
      %2103 = vst.msk [vmem:[%s240 + $0xc4] sm:$0xf] %vm2053, %v1878
      %2104 = vst.msk [vmem:[%s240 + $0xc8] sm:$0xf] %vm2053, %v1879
      %2105 = vst.msk [vmem:[%s240 + $0xcc] sm:$0xf] %vm2053, %v1880
      %2106 = vst.msk [vmem:[%s240 + $0xd0] sm:$0xf] %vm2053, %v1881
      %2107 = vst.msk [vmem:[%s240 + $0xd4] sm:$0xf] %vm2053, %v1882
      %2108 = vst.msk [vmem:[%s240 + $0xd8] sm:$0xf] %vm2053, %v1883
      %2109 = vst.msk [vmem:[%s240 + $0xdc] sm:$0xf] %vm2053, %v1884
      %2110 = vst.msk [vmem:[%s240 + $0xe0] sm:$0xf] %vm2053, %v1885
      %2111 = vst.msk [vmem:[%s240 + $0xe4] sm:$0xf] %vm2053, %v1886
      %2112 = vst.msk [vmem:[%s240 + $0xe8] sm:$0xf] %vm2053, %v1887
      %2113 = vst.msk [vmem:[%s240 + $0xec] sm:$0xf] %vm2053, %v1888
      %2114 = vst.msk [vmem:[%s240 + $0xf0] sm:$0xf] %vm2053, %v1889
      %2115 = vst.msk [vmem:[%s240 + $0xf4] sm:$0xf] %vm2053, %v1890
      %2116 = vst.msk [vmem:[%s240 + $0xf8] sm:$0xf] %vm2053, %v1891
      %2117 = vst.msk [vmem:[%s240 + $0xfc] sm:$0xf] %vm2053, %v1892
      %2118 = vst.msk [vmem:[%s240 + $0x100] sm:$0xf] %vm2053, %v1893
      %2119 = vst.msk [vmem:[%s240 + $0x104] sm:$0xf] %vm2053, %v1894
      %2120 = vst.msk [vmem:[%s240 + $0x108] sm:$0xf] %vm2053, %v1895
      %2121 = vst.msk [vmem:[%s240 + $0x10c] sm:$0xf] %vm2053, %v1896
      %2122 = vst.msk [vmem:[%s240 + $0x110] sm:$0xf] %vm2053, %v1897
      %2123 = vst.msk [vmem:[%s240 + $0x114] sm:$0xf] %vm2053, %v1898
      %2124 = vst.msk [vmem:[%s240 + $0x118] sm:$0xf] %vm2053, %v1899
      %2125 = vst.msk [vmem:[%s240 + $0x11c] sm:$0xf] %vm2053, %v1900
      %2126 = vst.msk [vmem:[%s240 + $0x120] sm:$0xf] %vm2053, %v1901
      %2127 = vst.msk [vmem:[%s240 + $0x124] sm:$0xf] %vm2053, %v1902
      %2128 = vst.msk [vmem:[%s240 + $0x128] sm:$0xf] %vm2053, %v1903
      %2129 = vst.msk [vmem:[%s240 + $0x12c] sm:$0xf] %vm2053, %v1904
      %2130 = vst.msk [vmem:[%s240 + $0x130] sm:$0xf] %vm2053, %v1905
      %2131 = vst.msk [vmem:[%s240 + $0x134] sm:$0xf] %vm2053, %v1906
      %2132 = vst.msk [vmem:[%s240 + $0x138] sm:$0xf] %vm2053, %v1907
      %2133 = vst.msk [vmem:[%s240 + $0x13c] sm:$0xf] %vm2053, %v1908
      %2134 = vst.msk [vmem:[%s240 + $0x140] sm:$0xf] %vm2053, %v1909
      %2135 = vst.msk [vmem:[%s240 + $0x144] sm:$0xf] %vm2053, %v1910
      %2136 = vst.msk [vmem:[%s240 + $0x148] sm:$0xf] %vm2053, %v1911
      %2137 = vst.msk [vmem:[%s240 + $0x14c] sm:$0xf] %vm2053, %v1912
      %2138 = vst.msk [vmem:[%s240 + $0x150] sm:$0xf] %vm2053, %v1913
      %2139 = vst.msk [vmem:[%s240 + $0x154] sm:$0xf] %vm2053, %v1914
      %2140 = vst.msk [vmem:[%s240 + $0x158] sm:$0xf] %vm2053, %v1915
      %2141 = vst.msk [vmem:[%s240 + $0x15c] sm:$0xf] %vm2053, %v1916
      %2142 = vst.msk [vmem:[%s240 + $0x160] sm:$0xf] %vm2053, %v1917
      %2143 = vst.msk [vmem:[%s240 + $0x164] sm:$0xf] %vm2053, %v1918
      %2144 = vst.msk [vmem:[%s240 + $0x168] sm:$0xf] %vm2053, %v1919
      %2145 = vst.msk [vmem:[%s240 + $0x16c] sm:$0xf] %vm2053, %v1920
      %2146 = vst.msk [vmem:[%s240 + $0x170] sm:$0xf] %vm2053, %v1921
      %2147 = vst.msk [vmem:[%s240 + $0x174] sm:$0xf] %vm2053, %v1922
      %2148 = vst.msk [vmem:[%s240 + $0x178] sm:$0xf] %vm2053, %v1923
      %2149 = vst.msk [vmem:[%s240 + $0x17c] sm:$0xf] %vm2053, %v1924
      %2150 = vst.msk [vmem:[%s240 + $0x180] sm:$0xf] %vm2053, %v1925
      %2151 = vst.msk [vmem:[%s240 + $0x184] sm:$0xf] %vm2053, %v1926
      %2152 = vst.msk [vmem:[%s240 + $0x188] sm:$0xf] %vm2053, %v1927
      %2153 = vst.msk [vmem:[%s240 + $0x18c] sm:$0xf] %vm2053, %v1928
      %2154 = vst.msk [vmem:[%s240 + $0x190] sm:$0xf] %vm2053, %v1929
      %2155 = vst.msk [vmem:[%s240 + $0x194] sm:$0xf] %vm2053, %v1930
      %2156 = vst.msk [vmem:[%s240 + $0x198] sm:$0xf] %vm2053, %v1931
      %2157 = vst.msk [vmem:[%s240 + $0x19c] sm:$0xf] %vm2053, %v1932
      %2158 = vst.msk [vmem:[%s240 + $0x1a0] sm:$0xf] %vm2053, %v1933
      %2159 = vst.msk [vmem:[%s240 + $0x1a4] sm:$0xf] %vm2053, %v1934
      %2160 = vst.msk [vmem:[%s240 + $0x1a8] sm:$0xf] %vm2053, %v1935
      %2161 = vst.msk [vmem:[%s240 + $0x1ac] sm:$0xf] %vm2053, %v1936
      %2162 = vst.msk [vmem:[%s240 + $0x1b0] sm:$0xf] %vm2053, %v1937
      %2163 = vst.msk [vmem:[%s240 + $0x1b4] sm:$0xf] %vm2053, %v1938
      %2164 = vst.msk [vmem:[%s240 + $0x1b8] sm:$0xf] %vm2053, %v1939
      %2165 = vst.msk [vmem:[%s240 + $0x1bc] sm:$0xf] %vm2053, %v1940
      %vm2166 = vcmask 523264
      %v2167 = vsel %vm2166, %v1159, 0.0
      %v2168 = vsel %vm2166, %v1162, 0.0
      %v2169 = vadd.f32 %v2167, %v2168
      %v2170 = vsel %vm2166, %v1167, 0.0
      %v2171 = vadd.f32 %v2169, %v2170
      %v2172 = vsel %vm2166, %v1170, 0.0
      %v2173 = vadd.f32 %v2171, %v2172
      %v2174 = vsel %vm2166, %v1175, 0.0
      %v2175 = vadd.f32 %v2173, %v2174
      %v2176 = vsel %vm2166, %v1178, 0.0
      %v2177 = vadd.f32 %v2175, %v2176
      %v2178 = vsel %vm2166, %v1183, 0.0
      %v2179 = vadd.f32 %v2177, %v2178
      %v2180 = vsel %vm2166, %v1186, 0.0
      %v2181 = vadd.f32 %v2179, %v2180
      %v2182 = vsel %vm2166, %v1191, 0.0
      %v2183 = vadd.f32 %v2181, %v2182
      %v2184 = vsel %vm2166, %v1194, 0.0
      %v2185 = vadd.f32 %v2183, %v2184
      %v2186 = vsel %vm2166, %v1199, 0.0
      %v2187 = vadd.f32 %v2185, %v2186
      %v2188 = vsel %vm2166, %v1202, 0.0
      %v2189 = vadd.f32 %v2187, %v2188
      %v2190 = vsel %vm2166, %v1207, 0.0
      %v2191 = vadd.f32 %v2189, %v2190
      %v2192 = vsel %vm2166, %v1210, 0.0
      %v2193 = vadd.f32 %v2191, %v2192
      %v2194 = vsel %vm2166, %v1215, 0.0
      %v2195 = vadd.f32 %v2193, %v2194
      %v2196 = vsel %vm2166, %v1218, 0.0
      %v2197 = vadd.f32 %v2195, %v2196
      %v2198 = vsel %vm2166, %v1223, 0.0
      %v2199 = vadd.f32 %v2197, %v2198
      %v2200 = vsel %vm2166, %v1226, 0.0
      %v2201 = vadd.f32 %v2199, %v2200
      %v2202 = vsel %vm2166, %v1231, 0.0
      %v2203 = vadd.f32 %v2201, %v2202
      %v2204 = vsel %vm2166, %v1234, 0.0
      %v2205 = vadd.f32 %v2203, %v2204
      %v2206 = vsel %vm2166, %v1239, 0.0
      %v2207 = vadd.f32 %v2205, %v2206
      %v2208 = vsel %vm2166, %v1242, 0.0
      %v2209 = vadd.f32 %v2207, %v2208
      %v2210 = vsel %vm2166, %v1247, 0.0
      %v2211 = vadd.f32 %v2209, %v2210
      %v2212 = vsel %vm2166, %v1250, 0.0
      %v2213 = vadd.f32 %v2211, %v2212
      %v2214 = vsel %vm2166, %v1255, 0.0
      %v2215 = vadd.f32 %v2213, %v2214
      %v2216 = vsel %vm2166, %v1258, 0.0
      %v2217 = vadd.f32 %v2215, %v2216
      %v2218 = vsel %vm2166, %v1263, 0.0
      %v2219 = vadd.f32 %v2217, %v2218
      %v2220 = vsel %vm2166, %v1266, 0.0
      %v2221 = vadd.f32 %v2219, %v2220
      %v2222 = vsel %vm2166, %v1271, 0.0
      %v2223 = vadd.f32 %v2221, %v2222
      %v2224 = vsel %vm2166, %v1274, 0.0
      %v2225 = vadd.f32 %v2223, %v2224
      %v2226 = vsel %vm2166, %v1279, 0.0
      %v2227 = vadd.f32 %v2225, %v2226
      %v2228 = vsel %vm2166, %v1282, 0.0
      %v2229 = vadd.f32 %v2227, %v2228
      %v2230 = vsel %vm2166, %v1287, 0.0
      %v2231 = vadd.f32 %v2229, %v2230
      %v2232 = vsel %vm2166, %v1290, 0.0
      %v2233 = vadd.f32 %v2231, %v2232
      %v2234 = vsel %vm2166, %v1295, 0.0
      %v2235 = vadd.f32 %v2233, %v2234
      %v2236 = vsel %vm2166, %v1298, 0.0
      %v2237 = vadd.f32 %v2235, %v2236
      %v2238 = vsel %vm2166, %v1303, 0.0
      %v2239 = vadd.f32 %v2237, %v2238
      %v2240 = vsel %vm2166, %v1306, 0.0
      %v2241 = vadd.f32 %v2239, %v2240
      %v2242 = vsel %vm2166, %v1311, 0.0
      %v2243 = vadd.f32 %v2241, %v2242
      %v2244 = vsel %vm2166, %v1314, 0.0
      %v2245 = vadd.f32 %v2243, %v2244
      %v2246 = vsel %vm2166, %v1319, 0.0
      %v2247 = vadd.f32 %v2245, %v2246
      %v2248 = vsel %vm2166, %v1322, 0.0
      %v2249 = vadd.f32 %v2247, %v2248
      %v2250 = vsel %vm2166, %v1327, 0.0
      %v2251 = vadd.f32 %v2249, %v2250
      %v2252 = vsel %vm2166, %v1330, 0.0
      %v2253 = vadd.f32 %v2251, %v2252
      %v2254 = vsel %vm2166, %v1335, 0.0
      %v2255 = vadd.f32 %v2253, %v2254
      %v2256 = vsel %vm2166, %v1338, 0.0
      %v2257 = vadd.f32 %v2255, %v2256
      %v2258 = vsel %vm2166, %v1343, 0.0
      %v2259 = vadd.f32 %v2257, %v2258
      %v2260 = vsel %vm2166, %v1346, 0.0
      %v2261 = vadd.f32 %v2259, %v2260
      %v2262 = vsel %vm2166, %v1351, 0.0
      %v2263 = vadd.f32 %v2261, %v2262
      %v2264 = vsel %vm2166, %v1354, 0.0
      %v2265 = vadd.f32 %v2263, %v2264
      %v2266 = vsel %vm2166, %v1359, 0.0
      %v2267 = vadd.f32 %v2265, %v2266
      %v2268 = vsel %vm2166, %v1362, 0.0
      %v2269 = vadd.f32 %v2267, %v2268
      %v2270 = vsel %vm2166, %v1367, 0.0
      %v2271 = vadd.f32 %v2269, %v2270
      %v2272 = vsel %vm2166, %v1370, 0.0
      %v2273 = vadd.f32 %v2271, %v2272
      %v2274 = vsel %vm2166, %v1375, 0.0
      %v2275 = vadd.f32 %v2273, %v2274
      %v2276 = vsel %vm2166, %v1378, 0.0
      %v2277 = vadd.f32 %v2275, %v2276
      %v2278 = vsel %vm2166, %v1383, 0.0
      %v2279 = vadd.f32 %v2277, %v2278
      %v2280 = vsel %vm2166, %v1386, 0.0
      %v2281 = vadd.f32 %v2279, %v2280
      %v2282 = vsel %vm2166, %v1391, 0.0
      %v2283 = vadd.f32 %v2281, %v2282
      %v2284 = vsel %vm2166, %v1394, 0.0
      %v2285 = vadd.f32 %v2283, %v2284
      %v2286 = vsel %vm2166, %v1399, 0.0
      %v2287 = vadd.f32 %v2285, %v2286
      %v2288 = vsel %vm2166, %v1402, 0.0
      %v2289 = vadd.f32 %v2287, %v2288
      %v2290 = vsel %vm2166, %v1407, 0.0
      %v2291 = vadd.f32 %v2289, %v2290
      %v2292 = vsel %vm2166, %v1410, 0.0
      %v2293 = vadd.f32 %v2291, %v2292
      %v2294 = vsel %vm2166, %v1415, 0.0
      %v2295 = vadd.f32 %v2293, %v2294
      %v2296 = vsel %vm2166, %v1418, 0.0
      %v2297 = vadd.f32 %v2295, %v2296
      %v2298 = vsel %vm2166, %v1423, 0.0
      %v2299 = vadd.f32 %v2297, %v2298
      %v2300 = vsel %vm2166, %v1426, 0.0
      %v2301 = vadd.f32 %v2299, %v2300
      %v2302 = vsel %vm2166, %v1431, 0.0
      %v2303 = vadd.f32 %v2301, %v2302
      %v2304 = vsel %vm2166, %v1434, 0.0
      %v2305 = vadd.f32 %v2303, %v2304
      %v2306 = vsel %vm2166, %v1439, 0.0
      %v2307 = vadd.f32 %v2305, %v2306
      %v2308 = vsel %vm2166, %v1442, 0.0
      %v2309 = vadd.f32 %v2307, %v2308
      %v2310 = vsel %vm2166, %v1447, 0.0
      %v2311 = vadd.f32 %v2309, %v2310
      %v2312 = vsel %vm2166, %v1450, 0.0
      %v2313 = vadd.f32 %v2311, %v2312
      %v2314 = vsel %vm2166, %v1455, 0.0
      %v2315 = vadd.f32 %v2313, %v2314
      %v2316 = vsel %vm2166, %v1458, 0.0
      %v2317 = vadd.f32 %v2315, %v2316
      %v2318 = vsel %vm2166, %v1463, 0.0
      %v2319 = vadd.f32 %v2317, %v2318
      %v2320 = vsel %vm2166, %v1466, 0.0
      %v2321 = vadd.f32 %v2319, %v2320
      %v2322 = vsel %vm2166, %v1471, 0.0
      %v2323 = vadd.f32 %v2321, %v2322
      %v2324 = vsel %vm2166, %v1474, 0.0
      %v2325 = vadd.f32 %v2323, %v2324
      %v2326 = vsel %vm2166, %v1479, 0.0
      %v2327 = vadd.f32 %v2325, %v2326
      %v2328 = vsel %vm2166, %v1482, 0.0
      %v2329 = vadd.f32 %v2327, %v2328
      %v2330 = vsel %vm2166, %v1487, 0.0
      %v2331 = vadd.f32 %v2329, %v2330
      %v2332 = vsel %vm2166, %v1490, 0.0
      %v2333 = vadd.f32 %v2331, %v2332
      %v2334 = vsel %vm2166, %v1495, 0.0
      %v2335 = vadd.f32 %v2333, %v2334
      %v2336 = vsel %vm2166, %v1498, 0.0
      %v2337 = vadd.f32 %v2335, %v2336
      %v2338 = vsel %vm2166, %v1503, 0.0
      %v2339 = vadd.f32 %v2337, %v2338
      %v2340 = vsel %vm2166, %v1506, 0.0
      %v2341 = vadd.f32 %v2339, %v2340
      %v2342 = vsel %vm2166, %v1511, 0.0
      %v2343 = vadd.f32 %v2341, %v2342
      %v2344 = vsel %vm2166, %v1514, 0.0
      %v2345 = vadd.f32 %v2343, %v2344
      %v2346 = vsel %vm2166, %v1519, 0.0
      %v2347 = vadd.f32 %v2345, %v2346
      %v2348 = vsel %vm2166, %v1522, 0.0
      %v2349 = vadd.f32 %v2347, %v2348
      %v2350 = vsel %vm2166, %v1527, 0.0
      %v2351 = vadd.f32 %v2349, %v2350
      %v2352 = vsel %vm2166, %v1530, 0.0
      %v2353 = vadd.f32 %v2351, %v2352
      %v2354 = vsel %vm2166, %v1535, 0.0
      %v2355 = vadd.f32 %v2353, %v2354
      %v2356 = vsel %vm2166, %v1538, 0.0
      %v2357 = vadd.f32 %v2355, %v2356
      %v2358 = vsel %vm2166, %v1543, 0.0
      %v2359 = vadd.f32 %v2357, %v2358
      %v2360 = vsel %vm2166, %v1546, 0.0
      %v2361 = vadd.f32 %v2359, %v2360
      %v2362 = vsel %vm2166, %v1551, 0.0
      %v2363 = vadd.f32 %v2361, %v2362
      %v2364 = vsel %vm2166, %v1554, 0.0
      %v2365 = vadd.f32 %v2363, %v2364
      %v2366 = vsel %vm2166, %v1559, 0.0
      %v2367 = vadd.f32 %v2365, %v2366
      %v2368 = vsel %vm2166, %v1562, 0.0
      %v2369 = vadd.f32 %v2367, %v2368
      %v2370 = vsel %vm2166, %v1567, 0.0
      %v2371 = vadd.f32 %v2369, %v2370
      %v2372 = vsel %vm2166, %v1570, 0.0
      %v2373 = vadd.f32 %v2371, %v2372
      %v2374 = vsel %vm2166, %v1575, 0.0
      %v2375 = vadd.f32 %v2373, %v2374
      %v2376 = vsel %vm2166, %v1578, 0.0
      %v2377 = vadd.f32 %v2375, %v2376
      %v2378 = vsel %vm2166, %v1583, 0.0
      %v2379 = vadd.f32 %v2377, %v2378
      %v2380 = vsel %vm2166, %v1586, 0.0
      %v2381 = vadd.f32 %v2379, %v2380
      %v2382 = vsel %vm2166, %v1591, 0.0
      %v2383 = vadd.f32 %v2381, %v2382
      %v2384 = vsel %vm2166, %v1594, 0.0
      %v2385 = vadd.f32 %v2383, %v2384
      %v2386 = vsel %vm2166, %v1599, 0.0
      %v2387 = vadd.f32 %v2385, %v2386
      %v2388 = vsel %vm2166, %v1602, 0.0
      %v2389 = vadd.f32 %v2387, %v2388
      %v2390 = vrot.slane %v2389, 4
      %v2391 = vadd.f32 %v2389, %v2390
      %v2392 = vrot.slane %v2391, 2
      %v2393 = vadd.f32 %v2391, %v2392
      %v2394 = vrot.slane %v2393, 1
      %v2395 = vadd.f32 %v2393, %v2394
      %vm2396 = vcmask 516096
      %2397 = vst.msk [vmem:[%s244] sm:$0x1] %vm2396, %v2395
      %v2398 = vmul.f32 %v1159, %v1159
      %v2399 = vmul.f32 %v1162, %v1162
      %v2400 = vmul.f32 %v1167, %v1167
      %v2401 = vmul.f32 %v1170, %v1170
      %v2402 = vmul.f32 %v1175, %v1175
      %v2403 = vmul.f32 %v1178, %v1178
      %v2404 = vmul.f32 %v1183, %v1183
      %v2405 = vmul.f32 %v1186, %v1186
      %v2406 = vmul.f32 %v1191, %v1191
      %v2407 = vmul.f32 %v1194, %v1194
      %v2408 = vmul.f32 %v1199, %v1199
      %v2409 = vmul.f32 %v1202, %v1202
      %v2410 = vmul.f32 %v1207, %v1207
      %v2411 = vmul.f32 %v1210, %v1210
      %v2412 = vmul.f32 %v1215, %v1215
      %v2413 = vmul.f32 %v1218, %v1218
      %v2414 = vmul.f32 %v1223, %v1223
      %v2415 = vmul.f32 %v1226, %v1226
      %v2416 = vmul.f32 %v1231, %v1231
      %v2417 = vmul.f32 %v1234, %v1234
      %v2418 = vmul.f32 %v1239, %v1239
      %v2419 = vmul.f32 %v1242, %v1242
      %v2420 = vmul.f32 %v1247, %v1247
      %v2421 = vmul.f32 %v1250, %v1250
      %v2422 = vmul.f32 %v1255, %v1255
      %v2423 = vmul.f32 %v1258, %v1258
      %v2424 = vmul.f32 %v1263, %v1263
      %v2425 = vmul.f32 %v1266, %v1266
      %v2426 = vmul.f32 %v1271, %v1271
      %v2427 = vmul.f32 %v1274, %v1274
      %v2428 = vmul.f32 %v1279, %v1279
      %v2429 = vmul.f32 %v1282, %v1282
      %v2430 = vmul.f32 %v1287, %v1287
      %v2431 = vmul.f32 %v1290, %v1290
      %v2432 = vmul.f32 %v1295, %v1295
      %v2433 = vmul.f32 %v1298, %v1298
      %v2434 = vmul.f32 %v1303, %v1303
      %v2435 = vmul.f32 %v1306, %v1306
      %v2436 = vmul.f32 %v1311, %v1311
      %v2437 = vmul.f32 %v1314, %v1314
      %v2438 = vmul.f32 %v1319, %v1319
      %v2439 = vmul.f32 %v1322, %v1322
      %v2440 = vmul.f32 %v1327, %v1327
      %v2441 = vmul.f32 %v1330, %v1330
      %v2442 = vmul.f32 %v1335, %v1335
      %v2443 = vmul.f32 %v1338, %v1338
      %v2444 = vmul.f32 %v1343, %v1343
      %v2445 = vmul.f32 %v1346, %v1346
      %v2446 = vmul.f32 %v1351, %v1351
      %v2447 = vmul.f32 %v1354, %v1354
      %v2448 = vmul.f32 %v1359, %v1359
      %v2449 = vmul.f32 %v1362, %v1362
      %v2450 = vmul.f32 %v1367, %v1367
      %v2451 = vmul.f32 %v1370, %v1370
      %v2452 = vmul.f32 %v1375, %v1375
      %v2453 = vmul.f32 %v1378, %v1378
      %v2454 = vmul.f32 %v1383, %v1383
      %v2455 = vmul.f32 %v1386, %v1386
      %v2456 = vmul.f32 %v1391, %v1391
      %v2457 = vmul.f32 %v1394, %v1394
      %v2458 = vmul.f32 %v1399, %v1399
      %v2459 = vmul.f32 %v1402, %v1402
      %v2460 = vmul.f32 %v1407, %v1407
      %v2461 = vmul.f32 %v1410, %v1410
      %v2462 = vmul.f32 %v1415, %v1415
      %v2463 = vmul.f32 %v1418, %v1418
      %v2464 = vmul.f32 %v1423, %v1423
      %v2465 = vmul.f32 %v1426, %v1426
      %v2466 = vmul.f32 %v1431, %v1431
      %v2467 = vmul.f32 %v1434, %v1434
      %v2468 = vmul.f32 %v1439, %v1439
      %v2469 = vmul.f32 %v1442, %v1442
      %v2470 = vmul.f32 %v1447, %v1447
      %v2471 = vmul.f32 %v1450, %v1450
      %v2472 = vmul.f32 %v1455, %v1455
      %v2473 = vmul.f32 %v1458, %v1458
      %v2474 = vmul.f32 %v1463, %v1463
      %v2475 = vmul.f32 %v1466, %v1466
      %v2476 = vmul.f32 %v1471, %v1471
      %v2477 = vmul.f32 %v1474, %v1474
      %v2478 = vmul.f32 %v1479, %v1479
      %v2479 = vmul.f32 %v1482, %v1482
      %v2480 = vmul.f32 %v1487, %v1487
      %v2481 = vmul.f32 %v1490, %v1490
      %v2482 = vmul.f32 %v1495, %v1495
      %v2483 = vmul.f32 %v1498, %v1498
      %v2484 = vmul.f32 %v1503, %v1503
      %v2485 = vmul.f32 %v1506, %v1506
      %v2486 = vmul.f32 %v1511, %v1511
      %v2487 = vmul.f32 %v1514, %v1514
      %v2488 = vmul.f32 %v1519, %v1519
      %v2489 = vmul.f32 %v1522, %v1522
      %v2490 = vmul.f32 %v1527, %v1527
      %v2491 = vmul.f32 %v1530, %v1530
      %v2492 = vmul.f32 %v1535, %v1535
      %v2493 = vmul.f32 %v1538, %v1538
      %v2494 = vmul.f32 %v1543, %v1543
      %v2495 = vmul.f32 %v1546, %v1546
      %v2496 = vmul.f32 %v1551, %v1551
      %v2497 = vmul.f32 %v1554, %v1554
      %v2498 = vmul.f32 %v1559, %v1559
      %v2499 = vmul.f32 %v1562, %v1562
      %v2500 = vmul.f32 %v1567, %v1567
      %v2501 = vmul.f32 %v1570, %v1570
      %v2502 = vmul.f32 %v1575, %v1575
      %v2503 = vmul.f32 %v1578, %v1578
      %v2504 = vmul.f32 %v1583, %v1583
      %v2505 = vmul.f32 %v1586, %v1586
      %v2506 = vmul.f32 %v1591, %v1591
      %v2507 = vmul.f32 %v1594, %v1594
      %v2508 = vmul.f32 %v1599, %v1599
      %v2509 = vmul.f32 %v1602, %v1602
      %v2510 = vsel %vm2166, %v2398, 0.0
      %v2511 = vsel %vm2166, %v2399, 0.0
      %v2512 = vadd.f32 %v2510, %v2511
      %v2513 = vsel %vm2166, %v2400, 0.0
      %v2514 = vadd.f32 %v2512, %v2513
      %v2515 = vsel %vm2166, %v2401, 0.0
      %v2516 = vadd.f32 %v2514, %v2515
      %v2517 = vsel %vm2166, %v2402, 0.0
      %v2518 = vadd.f32 %v2516, %v2517
      %v2519 = vsel %vm2166, %v2403, 0.0
      %v2520 = vadd.f32 %v2518, %v2519
      %v2521 = vsel %vm2166, %v2404, 0.0
      %v2522 = vadd.f32 %v2520, %v2521
      %v2523 = vsel %vm2166, %v2405, 0.0
      %v2524 = vadd.f32 %v2522, %v2523
      %v2525 = vsel %vm2166, %v2406, 0.0
      %v2526 = vadd.f32 %v2524, %v2525
      %v2527 = vsel %vm2166, %v2407, 0.0
      %v2528 = vadd.f32 %v2526, %v2527
      %v2529 = vsel %vm2166, %v2408, 0.0
      %v2530 = vadd.f32 %v2528, %v2529
      %v2531 = vsel %vm2166, %v2409, 0.0
      %v2532 = vadd.f32 %v2530, %v2531
      %v2533 = vsel %vm2166, %v2410, 0.0
      %v2534 = vadd.f32 %v2532, %v2533
      %v2535 = vsel %vm2166, %v2411, 0.0
      %v2536 = vadd.f32 %v2534, %v2535
      %v2537 = vsel %vm2166, %v2412, 0.0
      %v2538 = vadd.f32 %v2536, %v2537
      %v2539 = vsel %vm2166, %v2413, 0.0
      %v2540 = vadd.f32 %v2538, %v2539
      %v2541 = vsel %vm2166, %v2414, 0.0
      %v2542 = vadd.f32 %v2540, %v2541
      %v2543 = vsel %vm2166, %v2415, 0.0
      %v2544 = vadd.f32 %v2542, %v2543
      %v2545 = vsel %vm2166, %v2416, 0.0
      %v2546 = vadd.f32 %v2544, %v2545
      %v2547 = vsel %vm2166, %v2417, 0.0
      %v2548 = vadd.f32 %v2546, %v2547
      %v2549 = vsel %vm2166, %v2418, 0.0
      %v2550 = vadd.f32 %v2548, %v2549
      %v2551 = vsel %vm2166, %v2419, 0.0
      %v2552 = vadd.f32 %v2550, %v2551
      %v2553 = vsel %vm2166, %v2420, 0.0
      %v2554 = vadd.f32 %v2552, %v2553
      %v2555 = vsel %vm2166, %v2421, 0.0
      %v2556 = vadd.f32 %v2554, %v2555
      %v2557 = vsel %vm2166, %v2422, 0.0
      %v2558 = vadd.f32 %v2556, %v2557
      %v2559 = vsel %vm2166, %v2423, 0.0
      %v2560 = vadd.f32 %v2558, %v2559
      %v2561 = vsel %vm2166, %v2424, 0.0
      %v2562 = vadd.f32 %v2560, %v2561
      %v2563 = vsel %vm2166, %v2425, 0.0
      %v2564 = vadd.f32 %v2562, %v2563
      %v2565 = vsel %vm2166, %v2426, 0.0
      %v2566 = vadd.f32 %v2564, %v2565
      %v2567 = vsel %vm2166, %v2427, 0.0
      %v2568 = vadd.f32 %v2566, %v2567
      %v2569 = vsel %vm2166, %v2428, 0.0
      %v2570 = vadd.f32 %v2568, %v2569
      %v2571 = vsel %vm2166, %v2429, 0.0
      %v2572 = vadd.f32 %v2570, %v2571
      %v2573 = vsel %vm2166, %v2430, 0.0
      %v2574 = vadd.f32 %v2572, %v2573
      %v2575 = vsel %vm2166, %v2431, 0.0
      %v2576 = vadd.f32 %v2574, %v2575
      %v2577 = vsel %vm2166, %v2432, 0.0
      %v2578 = vadd.f32 %v2576, %v2577
      %v2579 = vsel %vm2166, %v2433, 0.0
      %v2580 = vadd.f32 %v2578, %v2579
      %v2581 = vsel %vm2166, %v2434, 0.0
      %v2582 = vadd.f32 %v2580, %v2581
      %v2583 = vsel %vm2166, %v2435, 0.0
      %v2584 = vadd.f32 %v2582, %v2583
      %v2585 = vsel %vm2166, %v2436, 0.0
      %v2586 = vadd.f32 %v2584, %v2585
      %v2587 = vsel %vm2166, %v2437, 0.0
      %v2588 = vadd.f32 %v2586, %v2587
      %v2589 = vsel %vm2166, %v2438, 0.0
      %v2590 = vadd.f32 %v2588, %v2589
      %v2591 = vsel %vm2166, %v2439, 0.0
      %v2592 = vadd.f32 %v2590, %v2591
      %v2593 = vsel %vm2166, %v2440, 0.0
      %v2594 = vadd.f32 %v2592, %v2593
      %v2595 = vsel %vm2166, %v2441, 0.0
      %v2596 = vadd.f32 %v2594, %v2595
      %v2597 = vsel %vm2166, %v2442, 0.0
      %v2598 = vadd.f32 %v2596, %v2597
      %v2599 = vsel %vm2166, %v2443, 0.0
      %v2600 = vadd.f32 %v2598, %v2599
      %v2601 = vsel %vm2166, %v2444, 0.0
      %v2602 = vadd.f32 %v2600, %v2601
      %v2603 = vsel %vm2166, %v2445, 0.0
      %v2604 = vadd.f32 %v2602, %v2603
      %v2605 = vsel %vm2166, %v2446, 0.0
      %v2606 = vadd.f32 %v2604, %v2605
      %v2607 = vsel %vm2166, %v2447, 0.0
      %v2608 = vadd.f32 %v2606, %v2607
      %v2609 = vsel %vm2166, %v2448, 0.0
      %v2610 = vadd.f32 %v2608, %v2609
      %v2611 = vsel %vm2166, %v2449, 0.0
      %v2612 = vadd.f32 %v2610, %v2611
      %v2613 = vsel %vm2166, %v2450, 0.0
      %v2614 = vadd.f32 %v2612, %v2613
      %v2615 = vsel %vm2166, %v2451, 0.0
      %v2616 = vadd.f32 %v2614, %v2615
      %v2617 = vsel %vm2166, %v2452, 0.0
      %v2618 = vadd.f32 %v2616, %v2617
      %v2619 = vsel %vm2166, %v2453, 0.0
      %v2620 = vadd.f32 %v2618, %v2619
      %v2621 = vsel %vm2166, %v2454, 0.0
      %v2622 = vadd.f32 %v2620, %v2621
      %v2623 = vsel %vm2166, %v2455, 0.0
      %v2624 = vadd.f32 %v2622, %v2623
      %v2625 = vsel %vm2166, %v2456, 0.0
      %v2626 = vadd.f32 %v2624, %v2625
      %v2627 = vsel %vm2166, %v2457, 0.0
      %v2628 = vadd.f32 %v2626, %v2627
      %v2629 = vsel %vm2166, %v2458, 0.0
      %v2630 = vadd.f32 %v2628, %v2629
      %v2631 = vsel %vm2166, %v2459, 0.0
      %v2632 = vadd.f32 %v2630, %v2631
      %v2633 = vsel %vm2166, %v2460, 0.0
      %v2634 = vadd.f32 %v2632, %v2633
      %v2635 = vsel %vm2166, %v2461, 0.0
      %v2636 = vadd.f32 %v2634, %v2635
      %v2637 = vsel %vm2166, %v2462, 0.0
      %v2638 = vadd.f32 %v2636, %v2637
      %v2639 = vsel %vm2166, %v2463, 0.0
      %v2640 = vadd.f32 %v2638, %v2639
      %v2641 = vsel %vm2166, %v2464, 0.0
      %v2642 = vadd.f32 %v2640, %v2641
      %v2643 = vsel %vm2166, %v2465, 0.0
      %v2644 = vadd.f32 %v2642, %v2643
      %v2645 = vsel %vm2166, %v2466, 0.0
      %v2646 = vadd.f32 %v2644, %v2645
      %v2647 = vsel %vm2166, %v2467, 0.0
      %v2648 = vadd.f32 %v2646, %v2647
      %v2649 = vsel %vm2166, %v2468, 0.0
      %v2650 = vadd.f32 %v2648, %v2649
      %v2651 = vsel %vm2166, %v2469, 0.0
      %v2652 = vadd.f32 %v2650, %v2651
      %v2653 = vsel %vm2166, %v2470, 0.0
      %v2654 = vadd.f32 %v2652, %v2653
      %v2655 = vsel %vm2166, %v2471, 0.0
      %v2656 = vadd.f32 %v2654, %v2655
      %v2657 = vsel %vm2166, %v2472, 0.0
      %v2658 = vadd.f32 %v2656, %v2657
      %v2659 = vsel %vm2166, %v2473, 0.0
      %v2660 = vadd.f32 %v2658, %v2659
      %v2661 = vsel %vm2166, %v2474, 0.0
      %v2662 = vadd.f32 %v2660, %v2661
      %v2663 = vsel %vm2166, %v2475, 0.0
      %v2664 = vadd.f32 %v2662, %v2663
      %v2665 = vsel %vm2166, %v2476, 0.0
      %v2666 = vadd.f32 %v2664, %v2665
      %v2667 = vsel %vm2166, %v2477, 0.0
      %v2668 = vadd.f32 %v2666, %v2667
      %v2669 = vsel %vm2166, %v2478, 0.0
      %v2670 = vadd.f32 %v2668, %v2669
      %v2671 = vsel %vm2166, %v2479, 0.0
      %v2672 = vadd.f32 %v2670, %v2671
      %v2673 = vsel %vm2166, %v2480, 0.0
      %v2674 = vadd.f32 %v2672, %v2673
      %v2675 = vsel %vm2166, %v2481, 0.0
      %v2676 = vadd.f32 %v2674, %v2675
      %v2677 = vsel %vm2166, %v2482, 0.0
      %v2678 = vadd.f32 %v2676, %v2677
      %v2679 = vsel %vm2166, %v2483, 0.0
      %v2680 = vadd.f32 %v2678, %v2679
      %v2681 = vsel %vm2166, %v2484, 0.0
      %v2682 = vadd.f32 %v2680, %v2681
      %v2683 = vsel %vm2166, %v2485, 0.0
      %v2684 = vadd.f32 %v2682, %v2683
      %v2685 = vsel %vm2166, %v2486, 0.0
      %v2686 = vadd.f32 %v2684, %v2685
      %v2687 = vsel %vm2166, %v2487, 0.0
      %v2688 = vadd.f32 %v2686, %v2687
      %v2689 = vsel %vm2166, %v2488, 0.0
      %v2690 = vadd.f32 %v2688, %v2689
      %v2691 = vsel %vm2166, %v2489, 0.0
      %v2692 = vadd.f32 %v2690, %v2691
      %v2693 = vsel %vm2166, %v2490, 0.0
      %v2694 = vadd.f32 %v2692, %v2693
      %v2695 = vsel %vm2166, %v2491, 0.0
      %v2696 = vadd.f32 %v2694, %v2695
      %v2697 = vsel %vm2166, %v2492, 0.0
      %v2698 = vadd.f32 %v2696, %v2697
      %v2699 = vsel %vm2166, %v2493, 0.0
      %v2700 = vadd.f32 %v2698, %v2699
      %v2701 = vsel %vm2166, %v2494, 0.0
      %v2702 = vadd.f32 %v2700, %v2701
      %v2703 = vsel %vm2166, %v2495, 0.0
      %v2704 = vadd.f32 %v2702, %v2703
      %v2705 = vsel %vm2166, %v2496, 0.0
      %v2706 = vadd.f32 %v2704, %v2705
      %v2707 = vsel %vm2166, %v2497, 0.0
      %v2708 = vadd.f32 %v2706, %v2707
      %v2709 = vsel %vm2166, %v2498, 0.0
      %v2710 = vadd.f32 %v2708, %v2709
      %v2711 = vsel %vm2166, %v2499, 0.0
      %v2712 = vadd.f32 %v2710, %v2711
      %v2713 = vsel %vm2166, %v2500, 0.0
      %v2714 = vadd.f32 %v2712, %v2713
      %v2715 = vsel %vm2166, %v2501, 0.0
      %v2716 = vadd.f32 %v2714, %v2715
      %v2717 = vsel %vm2166, %v2502, 0.0
      %v2718 = vadd.f32 %v2716, %v2717
      %v2719 = vsel %vm2166, %v2503, 0.0
      %v2720 = vadd.f32 %v2718, %v2719
      %v2721 = vsel %vm2166, %v2504, 0.0
      %v2722 = vadd.f32 %v2720, %v2721
      %v2723 = vsel %vm2166, %v2505, 0.0
      %v2724 = vadd.f32 %v2722, %v2723
      %v2725 = vsel %vm2166, %v2506, 0.0
      %v2726 = vadd.f32 %v2724, %v2725
      %v2727 = vsel %vm2166, %v2507, 0.0
      %v2728 = vadd.f32 %v2726, %v2727
      %v2729 = vsel %vm2166, %v2508, 0.0
      %v2730 = vadd.f32 %v2728, %v2729
      %v2731 = vsel %vm2166, %v2509, 0.0
      %v2732 = vadd.f32 %v2730, %v2731
      %v2733 = vrot.slane %v2732, 4
      %v2734 = vadd.f32 %v2732, %v2733
      %v2735 = vrot.slane %v2734, 2
      %v2736 = vadd.f32 %v2734, %v2735
      %v2737 = vrot.slane %v2736, 1
      %v2738 = vadd.f32 %v2736, %v2737
      %2739 = vst.msk [vmem:[%s247] sm:$0x1] %vm2396, %v2738
      %s2740 = smul.u32 112, %s17
      %p2741 = scmp.lt.s32.totalorder %s2740, 3135
      %s2742 = scalar_select %p2741, %s2740, 3135
      %s2743 = smul.addr %s2742, 4
      %s2744 = scalar_lea.vmem %s3, %s2743
      %p2745 = scmp.lt.s32.totalorder %s17, 27
      %s2746 = scalar_select %p2745, %s17, 27
      %s2747 = scalar_lea.vmem %s4, %s2746
      %p2748 = scmp.lt.s32.totalorder %s17, 27
      %s2749 = scalar_select %p2748, %s17, 27
      %s2750 = scalar_lea.vmem %s5, %s2749
      // Predicated region
      $region33: #{matmul_bias_stats.1} parent=31 // pred_check
        %p2751 = pneg %p103
      $region34: #{matmul_bias_stats.1} parent=31 // pred_check_branch
        %2753 = sbr.rel (%p2751) target = $region36
      $region35: #{matmul_bias_stats.1} parent=31 // pred_region
        %s2754 = smul.u32 112, %s17
      $region36: #{matmul_bias_stats.1} parent=31 // pred_fallthru
        _
      // Predicated region
      $region37: #{matmul_bias_stats.1} parent=31 // pred_check
        %p2755 = pneg %p129
      $region38: #{matmul_bias_stats.1} parent=31 // pred_check_branch
        %2757 = sbr.rel (%p2755) target = $region40
      $region39: #{matmul_bias_stats.1} parent=31 // pred_region
        _
      $region40: #{matmul_bias_stats.1} parent=31 // pred_fallthru
        _
      // Predicated region
      $region41: #{matmul_bias_stats.1} parent=31 // pred_check
        %p2758 = pneg %p155
      $region42: #{matmul_bias_stats.1} parent=31 // pred_check_branch
        %2760 = sbr.rel (%p2758) target = $region44
      $region43: #{matmul_bias_stats.1} parent=31 // pred_region
        _
      $region44: #{matmul_bias_stats.1} parent=31 // pred_fallthru
        _
    $region32: #{matmul_bias_stats.1} parent=5 // pred_fallthru
      _
    %p2761 = scmp.le.s32.totalorder 2, %s12
    // Predicated region
    $region45: #{matmul_bias_stats.1} parent=5 // pred_check
      %p2762 = pneg %p2761
    $region46: #{matmul_bias_stats.1} parent=5 // pred_check_branch
      %2764 = sbr.rel (%p2762) target = $region48
    $region47: #{matmul_bias_stats.1} parent=5 // pred_region
      %s2765 = ssub.s32 %s12, 2
      // Predicated region
      $region49: #{matmul_bias_stats.1} parent=47 // pred_check
        %p2766 = pneg %p109
      $region50: #{matmul_bias_stats.1} parent=47 // pred_check_branch
        %2768 = sbr.rel (%p2766) target = $region52
      $region51: #{matmul_bias_stats.1} parent=47 // pred_region
        %s2769 = smul.u32 112, %s18
        %p2770 = scmp.lt.s32.totalorder %s2769, 3135
        %s2771 = scalar_select %p2770, %s2769, 3135
        %s2772 = smul.addr %s2771, 4
        %s2773 = scalar_lea.vmem %s3, %s2772
      $region52: #{matmul_bias_stats.1} parent=47 // pred_fallthru
        _
      // Predicated region
      $region53: #{matmul_bias_stats.1} parent=47 // pred_check
        %p2774 = pneg %p135
      $region54: #{matmul_bias_stats.1} parent=47 // pred_check_branch
        %2776 = sbr.rel (%p2774) target = $region56
      $region55: #{matmul_bias_stats.1} parent=47 // pred_region
        %p2777 = scmp.lt.s32.totalorder %s18, 27
        %s2778 = scalar_select %p2777, %s18, 27
        %s2779 = scalar_lea.vmem %s4, %s2778
      $region56: #{matmul_bias_stats.1} parent=47 // pred_fallthru
        _
      // Predicated region
      $region57: #{matmul_bias_stats.1} parent=47 // pred_check
        %p2780 = pneg %p161
      $region58: #{matmul_bias_stats.1} parent=47 // pred_check_branch
        %2782 = sbr.rel (%p2780) target = $region60
      $region59: #{matmul_bias_stats.1} parent=47 // pred_region
        %p2783 = scmp.lt.s32.totalorder %s18, 27
        %s2784 = scalar_select %p2783, %s18, 27
        %s2785 = scalar_lea.vmem %s5, %s2784
      $region60: #{matmul_bias_stats.1} parent=47 // pred_fallthru
        _
    $region48: #{matmul_bias_stats.1} parent=5 // pred_fallthru
      _
  $region6: #{matmul_bias_stats.1} parent=0 // loop_footer
    %s16 = sadd.s32 1, %s12
  $region7: #{matmul_bias_stats.1} parent=0 // loop_footer_branch
    %11 = sbr.rel target = $region3
  $region8: #{matmul_bias_stats.1} parent=0 // loop_exit
    _

</llo_original>
